<compile_context>
chip_gen: v7x
topology: tpu7x:2x2x1
jax: 0.10.0
libtpu: 0.0.40
codegen_flags: <defaults>
</compile_context>

<pallas_src>
import jax
import jax.numpy as jnp
import numpy as np
from jax.experimental import pallas as pl
from jax.experimental.pallas import tpu as pltpu

# --- model hyper-parameters (the reference script has vocab_size=len([])==0,
#     which is degenerate; we pick a small synthetic vocab instead) ---
VOCAB_SIZE = 27
N_EMBD = 64
N_HIDDEN = 256
BLOCK_SIZE = 3
BN_EPS = 1e-5

K_PAD = 256                         # layer-1 contraction dim, padded 192 -> 256
HEAD_PAD = 128                      # lane-dense output head width (sliced back to 27)
N_HIDDEN_LAYERS = 5


def _char_lm_kernel(x_ref, w_ref, gb_ref, w6_ref, b6_ref, out_ref):
    """5 x (Linear -> fused BatchNorm -> ReLU) + lane-dense head, whole batch in VMEM."""
    h = x_ref[...]                                       # (B, 256) bf16
    b_rows = h.shape[0]
    inv_b = jnp.float32(1.0 / b_rows)

    for i in range(N_HIDDEN_LAYERS):                     # statically unrolled
        # bf16 x bf16 matmul, f32 accumulation on the MXU
        z = jnp.dot(h, w_ref[i], preferred_element_type=jnp.float32)   # (B, 256) f32
        # BatchNorm (training mode, biased variance), two-pass stats for stability,
        # then a single fused per-element scale/shift + ReLU.
        mean = jnp.sum(z, axis=0, keepdims=True) * inv_b                # (1, 256)
        d = z - mean
        var = jnp.sum(d * d, axis=0, keepdims=True) * inv_b             # (1, 256)
        scale = gb_ref[i, 0:1, :] * jax.lax.rsqrt(var + BN_EPS)         # EUP rsqrt
        shift = gb_ref[i, 1:2, :] - mean * scale
        h = jnp.maximum(z * scale + shift, 0.0).astype(jnp.bfloat16)

    # lane-dense (128-wide) head; wrapper slices back to VOCAB_SIZE
    out_ref[...] = (jnp.dot(h, w6_ref[...], preferred_element_type=jnp.float32)
                    + b6_ref[...])


def init_params(key):
    """Deterministic parameter init mirroring CharLanguageModel._init_weights."""
    ks = jax.random.split(key, 8)
    p = {}

    # Embedding: normal(std=0.02). Stored bf16 (gather happens in the XLA wrapper).
    emb = 0.02 * jax.random.normal(ks[0], (VOCAB_SIZE, N_EMBD), jnp.float32)
    p["emb"] = emb.astype(jnp.bfloat16)

    # Hidden linears stacked into one (5, 256, 256) array.
    # kaiming_normal_(mode='fan_in', nonlinearity='relu') -> std = sqrt(2 / fan_in).
    fan_in0 = N_EMBD * BLOCK_SIZE                       # 192 (padded to 256 with zeros)
    w_hidden = jnp.zeros((N_HIDDEN_LAYERS, K_PAD, N_HIDDEN), jnp.float32)
    w_hidden = w_hidden.at[0, :fan_in0, :].set(
        jnp.sqrt(2.0 / fan_in0)
        * jax.random.normal(ks[1], (fan_in0, N_HIDDEN), jnp.float32))
    for i, k in zip(range(1, N_HIDDEN_LAYERS), ks[2:6]):
        w_hidden = w_hidden.at[i].set(
            jnp.sqrt(2.0 / N_HIDDEN)
            * jax.random.normal(k, (N_HIDDEN, N_HIDDEN), jnp.float32))
    p["w_hidden"] = w_hidden.astype(jnp.bfloat16)

    # BatchNorm affine params stacked: gb[i, 0] = gamma_i (ones), gb[i, 1] = beta_i (zeros).
    gb = jnp.zeros((N_HIDDEN_LAYERS, 2, N_HIDDEN), jnp.float32)
    gb = gb.at[:, 0, :].set(1.0)
    p["gb"] = gb

    # Output head: normal(std=0.02) weights, PyTorch-default uniform bias. Padded to 128 lanes.
    w6 = jnp.zeros((N_HIDDEN, HEAD_PAD), jnp.float32)
    w6 = w6.at[:, :VOCAB_SIZE].set(
        0.02 * jax.random.normal(ks[6], (N_HIDDEN, VOCAB_SIZE), jnp.float32))
    p["w6"] = w6.astype(jnp.bfloat16)
    bound = 1.0 / np.sqrt(N_HIDDEN)
    b6 = jnp.zeros((1, HEAD_PAD), jnp.float32)
    b6 = b6.at[:, :VOCAB_SIZE].set(
        jax.random.uniform(ks[7], (1, VOCAB_SIZE), jnp.float32, -bound, bound))
    p["b6"] = b6                                        # f32 for the exact bias add
    return p


def char_lm_forward(tokens, params):
    """tokens: (B, block_size) int32 -> logits (B, vocab_size) float32."""
    B = tokens.shape[0]

    # Embedding gather + flatten + pad (192 -> 256) in plain XLA; 0.5 KiB/row DMA into
    # the kernel is cheaper than any in-kernel one-hot/gather scheme at every batch size.
    emb = jnp.take(params["emb"], tokens, axis=0)                # (B, 3, 64) bf16
    x = emb.reshape(B, BLOCK_SIZE * N_EMBD)
    x = jnp.pad(x, ((0, 0), (0, K_PAD - BLOCK_SIZE * N_EMBD))).astype(jnp.bfloat16)

    vmem = pl.BlockSpec(memory_space=pltpu.MemorySpace.VMEM)
    logits_pad = pl.pallas_call(
        _char_lm_kernel,
        out_shape=jax.ShapeDtypeStruct((B, HEAD_PAD), jnp.float32),
        in_specs=[vmem] * 5,
        out_specs=vmem,
        # Total footprint < 1 MiB (weights 640 KiB + activations); conservative limit
        # well under the default scoped VMEM on v5e/v6e/v7x.
        compiler_params=pltpu.CompilerParams(vmem_limit_bytes=16 << 20),
    )(x, params["w_hidden"], params["gb"], params["w6"], params["b6"])
    return logits_pad[:, :VOCAB_SIZE]


def _reference_forward(tokens, params):
    """Pure-JAX reference with the same precision strategy (bf16 matmuls, f32 stats)."""
    B = tokens.shape[0]
    emb = jnp.take(params["emb"], tokens, axis=0)
    h = jnp.pad(emb.reshape(B, -1),
                ((0, 0), (0, K_PAD - BLOCK_SIZE * N_EMBD))).astype(jnp.bfloat16)
    for i in range(N_HIDDEN_LAYERS):
        z = jnp.dot(h, params["w_hidden"][i], preferred_element_type=jnp.float32)
        mean = jnp.mean(z, axis=0, keepdims=True)
        var = jnp.mean(jnp.square(z - mean), axis=0, keepdims=True)
        scale = params["gb"][i, 0:1, :] * jax.lax.rsqrt(var + BN_EPS)
        shift = params["gb"][i, 1:2, :] - mean * scale
        h = jnp.maximum(z * scale + shift, 0.0).astype(jnp.bfloat16)
    logits = jnp.dot(h, params["w6"], preferred_element_type=jnp.float32) + params["b6"]
    return logits[:, :VOCAB_SIZE]


if __name__ == "__main__":
    key = jax.random.PRNGKey(0)
    pkey, tkey = jax.random.split(key)
    params = init_params(pkey)

    B = 8
    tokens = jax.random.randint(tkey, (B, BLOCK_SIZE), 0, VOCAB_SIZE, dtype=jnp.int32)

    logits = char_lm_forward(tokens, params)
    logits = jax.block_until_ready(logits)

    ref = _reference_forward(tokens, params)
    assert logits.shape == (B, VOCAB_SIZE)
    np.testing.assert_allclose(np.asarray(logits), np.asarray(ref), rtol=1e-2, atol=1e-2)

    print("KERNEL_OK")
</pallas_src>

<mosaic_0001>
module attributes {stable_mosaic.version = 11 : i64} {
  func.func @_char_lm_kernel(%arg0: memref<8x256xbf16, #tpu.memory_space<vmem>>, %arg1: memref<5x256x256xbf16, #tpu.memory_space<vmem>>, %arg2: memref<5x2x256xf32, #tpu.memory_space<vmem>>, %arg3: memref<256x128xbf16, #tpu.memory_space<vmem>>, %arg4: memref<1x128xf32, #tpu.memory_space<vmem>>, %arg5: memref<8x128xf32, #tpu.memory_space<vmem>>) attributes {dimension_semantics = [], scalar_prefetch = 0 : i64, scratch_operands = 0 : i64, tpu.core_type = #tpu.core_type<tc>} {
    %c0 = arith.constant 0 : index
    %c0_0 = arith.constant 0 : index
    %0 = vector.load %arg0[%c0, %c0_0] : memref<8x256xbf16, #tpu.memory_space<vmem>>, vector<8x256xbf16>
    %c0_1 = arith.constant 0 : index
    %c0_2 = arith.constant 0 : index
    %c0_3 = arith.constant 0 : index
    %1 = vector.load %arg1[%c0_1, %c0_2, %c0_3] : memref<5x256x256xbf16, #tpu.memory_space<vmem>>, vector<1x256x256xbf16>
    %2 = vector.shape_cast %1 : vector<1x256x256xbf16> to vector<256x256xbf16>
    %cst = arith.constant dense<0.000000e+00> : vector<8x256xf32>
    %3 = tpu.matmul %0, %2, %cst {dimension_numbers = #tpu.dot_dimension_numbers<[1], [0], [0], [1], [0, 0, 1, 1], [], []>} : vector<8x256xbf16>, vector<256x256xbf16>, vector<8x256xf32> -> vector<8x256xf32>
    %cst_4 = arith.constant dense<0.000000e+00> : vector<256xf32>
    %4 = vector.multi_reduction <add>, %3, %cst_4 [0] : vector<8x256xf32> to vector<256xf32>
    %5 = vector.shape_cast %4 : vector<256xf32> to vector<1x256xf32>
    %cst_5 = arith.constant 1.250000e-01 : f32
    %6 = vector.broadcast %cst_5 : f32 to vector<1x256xf32>
    %7 = arith.mulf %5, %6 : vector<1x256xf32>
    %8 = vector.broadcast %7 : vector<1x256xf32> to vector<8x256xf32>
    %9 = arith.subf %3, %8 : vector<8x256xf32>
    %10 = arith.mulf %9, %9 : vector<8x256xf32>
    %cst_6 = arith.constant dense<0.000000e+00> : vector<256xf32>
    %11 = vector.multi_reduction <add>, %10, %cst_6 [0] : vector<8x256xf32> to vector<256xf32>
    %12 = vector.shape_cast %11 : vector<256xf32> to vector<1x256xf32>
    %cst_7 = arith.constant 1.250000e-01 : f32
    %13 = vector.broadcast %cst_7 : f32 to vector<1x256xf32>
    %14 = arith.mulf %12, %13 : vector<1x256xf32>
    %c0_8 = arith.constant 0 : index
    %c0_9 = arith.constant 0 : index
    %c0_10 = arith.constant 0 : index
    %15 = vector.load %arg2[%c0_8, %c0_9, %c0_10] : memref<5x2x256xf32, #tpu.memory_space<vmem>>, vector<1x1x256xf32>
    %16 = vector.shape_cast %15 : vector<1x1x256xf32> to vector<1x256xf32>
    %cst_11 = arith.constant 9.99999974E-6 : f32
    %17 = vector.broadcast %cst_11 : f32 to vector<1x256xf32>
    %18 = arith.addf %14, %17 : vector<1x256xf32>
    %19 = math.rsqrt %18 : vector<1x256xf32>
    %20 = arith.mulf %16, %19 : vector<1x256xf32>
    %c0_12 = arith.constant 0 : index
    %c1 = arith.constant 1 : index
    %c0_13 = arith.constant 0 : index
    %21 = vector.load %arg2[%c0_12, %c1, %c0_13] : memref<5x2x256xf32, #tpu.memory_space<vmem>>, vector<1x1x256xf32>
    %22 = vector.shape_cast %21 : vector<1x1x256xf32> to vector<1x256xf32>
    %23 = arith.mulf %7, %20 : vector<1x256xf32>
    %24 = arith.subf %22, %23 : vector<1x256xf32>
    %25 = vector.broadcast %20 : vector<1x256xf32> to vector<8x256xf32>
    %26 = arith.mulf %3, %25 : vector<8x256xf32>
    %27 = vector.broadcast %24 : vector<1x256xf32> to vector<8x256xf32>
    %28 = arith.addf %26, %27 : vector<8x256xf32>
    %cst_14 = arith.constant 0.000000e+00 : f32
    %29 = vector.broadcast %cst_14 : f32 to vector<8x256xf32>
    %30 = arith.maximumf %28, %29 : vector<8x256xf32>
    %31 = arith.truncf %30 : vector<8x256xf32> to vector<8x256xbf16>
    %c1_15 = arith.constant 1 : index
    %c0_16 = arith.constant 0 : index
    %c0_17 = arith.constant 0 : index
    %32 = vector.load %arg1[%c1_15, %c0_16, %c0_17] : memref<5x256x256xbf16, #tpu.memory_space<vmem>>, vector<1x256x256xbf16>
    %33 = vector.shape_cast %32 : vector<1x256x256xbf16> to vector<256x256xbf16>
    %cst_18 = arith.constant dense<0.000000e+00> : vector<8x256xf32>
    %34 = tpu.matmul %31, %33, %cst_18 {dimension_numbers = #tpu.dot_dimension_numbers<[1], [0], [0], [1], [0, 0, 1, 1], [], []>} : vector<8x256xbf16>, vector<256x256xbf16>, vector<8x256xf32> -> vector<8x256xf32>
    %cst_19 = arith.constant dense<0.000000e+00> : vector<256xf32>
    %35 = vector.multi_reduction <add>, %34, %cst_19 [0] : vector<8x256xf32> to vector<256xf32>
    %36 = vector.shape_cast %35 : vector<256xf32> to vector<1x256xf32>
    %cst_20 = arith.constant 1.250000e-01 : f32
    %37 = vector.broadcast %cst_20 : f32 to vector<1x256xf32>
    %38 = arith.mulf %36, %37 : vector<1x256xf32>
    %39 = vector.broadcast %38 : vector<1x256xf32> to vector<8x256xf32>
    %40 = arith.subf %34, %39 : vector<8x256xf32>
    %41 = arith.mulf %40, %40 : vector<8x256xf32>
    %cst_21 = arith.constant dense<0.000000e+00> : vector<256xf32>
    %42 = vector.multi_reduction <add>, %41, %cst_21 [0] : vector<8x256xf32> to vector<256xf32>
    %43 = vector.shape_cast %42 : vector<256xf32> to vector<1x256xf32>
    %cst_22 = arith.constant 1.250000e-01 : f32
    %44 = vector.broadcast %cst_22 : f32 to vector<1x256xf32>
    %45 = arith.mulf %43, %44 : vector<1x256xf32>
    %c1_23 = arith.constant 1 : index
    %c0_24 = arith.constant 0 : index
    %c0_25 = arith.constant 0 : index
    %46 = vector.load %arg2[%c1_23, %c0_24, %c0_25] : memref<5x2x256xf32, #tpu.memory_space<vmem>>, vector<1x1x256xf32>
    %47 = vector.shape_cast %46 : vector<1x1x256xf32> to vector<1x256xf32>
    %cst_26 = arith.constant 9.99999974E-6 : f32
    %48 = vector.broadcast %cst_26 : f32 to vector<1x256xf32>
    %49 = arith.addf %45, %48 : vector<1x256xf32>
    %50 = math.rsqrt %49 : vector<1x256xf32>
    %51 = arith.mulf %47, %50 : vector<1x256xf32>
    %c1_27 = arith.constant 1 : index
    %c1_28 = arith.constant 1 : index
    %c0_29 = arith.constant 0 : index
    %52 = vector.load %arg2[%c1_27, %c1_28, %c0_29] : memref<5x2x256xf32, #tpu.memory_space<vmem>>, vector<1x1x256xf32>
    %53 = vector.shape_cast %52 : vector<1x1x256xf32> to vector<1x256xf32>
    %54 = arith.mulf %38, %51 : vector<1x256xf32>
    %55 = arith.subf %53, %54 : vector<1x256xf32>
    %56 = vector.broadcast %51 : vector<1x256xf32> to vector<8x256xf32>
    %57 = arith.mulf %34, %56 : vector<8x256xf32>
    %58 = vector.broadcast %55 : vector<1x256xf32> to vector<8x256xf32>
    %59 = arith.addf %57, %58 : vector<8x256xf32>
    %cst_30 = arith.constant 0.000000e+00 : f32
    %60 = vector.broadcast %cst_30 : f32 to vector<8x256xf32>
    %61 = arith.maximumf %59, %60 : vector<8x256xf32>
    %62 = arith.truncf %61 : vector<8x256xf32> to vector<8x256xbf16>
    %c2 = arith.constant 2 : index
    %c0_31 = arith.constant 0 : index
    %c0_32 = arith.constant 0 : index
    %63 = vector.load %arg1[%c2, %c0_31, %c0_32] : memref<5x256x256xbf16, #tpu.memory_space<vmem>>, vector<1x256x256xbf16>
    %64 = vector.shape_cast %63 : vector<1x256x256xbf16> to vector<256x256xbf16>
    %cst_33 = arith.constant dense<0.000000e+00> : vector<8x256xf32>
    %65 = tpu.matmul %62, %64, %cst_33 {dimension_numbers = #tpu.dot_dimension_numbers<[1], [0], [0], [1], [0, 0, 1, 1], [], []>} : vector<8x256xbf16>, vector<256x256xbf16>, vector<8x256xf32> -> vector<8x256xf32>
    %cst_34 = arith.constant dense<0.000000e+00> : vector<256xf32>
    %66 = vector.multi_reduction <add>, %65, %cst_34 [0] : vector<8x256xf32> to vector<256xf32>
    %67 = vector.shape_cast %66 : vector<256xf32> to vector<1x256xf32>
    %cst_35 = arith.constant 1.250000e-01 : f32
    %68 = vector.broadcast %cst_35 : f32 to vector<1x256xf32>
    %69 = arith.mulf %67, %68 : vector<1x256xf32>
    %70 = vector.broadcast %69 : vector<1x256xf32> to vector<8x256xf32>
    %71 = arith.subf %65, %70 : vector<8x256xf32>
    %72 = arith.mulf %71, %71 : vector<8x256xf32>
    %cst_36 = arith.constant dense<0.000000e+00> : vector<256xf32>
    %73 = vector.multi_reduction <add>, %72, %cst_36 [0] : vector<8x256xf32> to vector<256xf32>
    %74 = vector.shape_cast %73 : vector<256xf32> to vector<1x256xf32>
    %cst_37 = arith.constant 1.250000e-01 : f32
    %75 = vector.broadcast %cst_37 : f32 to vector<1x256xf32>
    %76 = arith.mulf %74, %75 : vector<1x256xf32>
    %c2_38 = arith.constant 2 : index
    %c0_39 = arith.constant 0 : index
    %c0_40 = arith.constant 0 : index
    %77 = vector.load %arg2[%c2_38, %c0_39, %c0_40] : memref<5x2x256xf32, #tpu.memory_space<vmem>>, vector<1x1x256xf32>
    %78 = vector.shape_cast %77 : vector<1x1x256xf32> to vector<1x256xf32>
    %cst_41 = arith.constant 9.99999974E-6 : f32
    %79 = vector.broadcast %cst_41 : f32 to vector<1x256xf32>
    %80 = arith.addf %76, %79 : vector<1x256xf32>
    %81 = math.rsqrt %80 : vector<1x256xf32>
    %82 = arith.mulf %78, %81 : vector<1x256xf32>
    %c2_42 = arith.constant 2 : index
    %c1_43 = arith.constant 1 : index
    %c0_44 = arith.constant 0 : index
    %83 = vector.load %arg2[%c2_42, %c1_43, %c0_44] : memref<5x2x256xf32, #tpu.memory_space<vmem>>, vector<1x1x256xf32>
    %84 = vector.shape_cast %83 : vector<1x1x256xf32> to vector<1x256xf32>
    %85 = arith.mulf %69, %82 : vector<1x256xf32>
    %86 = arith.subf %84, %85 : vector<1x256xf32>
    %87 = vector.broadcast %82 : vector<1x256xf32> to vector<8x256xf32>
    %88 = arith.mulf %65, %87 : vector<8x256xf32>
    %89 = vector.broadcast %86 : vector<1x256xf32> to vector<8x256xf32>
    %90 = arith.addf %88, %89 : vector<8x256xf32>
    %cst_45 = arith.constant 0.000000e+00 : f32
    %91 = vector.broadcast %cst_45 : f32 to vector<8x256xf32>
    %92 = arith.maximumf %90, %91 : vector<8x256xf32>
    %93 = arith.truncf %92 : vector<8x256xf32> to vector<8x256xbf16>
    %c3 = arith.constant 3 : index
    %c0_46 = arith.constant 0 : index
    %c0_47 = arith.constant 0 : index
    %94 = vector.load %arg1[%c3, %c0_46, %c0_47] : memref<5x256x256xbf16, #tpu.memory_space<vmem>>, vector<1x256x256xbf16>
    %95 = vector.shape_cast %94 : vector<1x256x256xbf16> to vector<256x256xbf16>
    %cst_48 = arith.constant dense<0.000000e+00> : vector<8x256xf32>
    %96 = tpu.matmul %93, %95, %cst_48 {dimension_numbers = #tpu.dot_dimension_numbers<[1], [0], [0], [1], [0, 0, 1, 1], [], []>} : vector<8x256xbf16>, vector<256x256xbf16>, vector<8x256xf32> -> vector<8x256xf32>
    %cst_49 = arith.constant dense<0.000000e+00> : vector<256xf32>
    %97 = vector.multi_reduction <add>, %96, %cst_49 [0] : vector<8x256xf32> to vector<256xf32>
    %98 = vector.shape_cast %97 : vector<256xf32> to vector<1x256xf32>
    %cst_50 = arith.constant 1.250000e-01 : f32
    %99 = vector.broadcast %cst_50 : f32 to vector<1x256xf32>
    %100 = arith.mulf %98, %99 : vector<1x256xf32>
    %101 = vector.broadcast %100 : vector<1x256xf32> to vector<8x256xf32>
    %102 = arith.subf %96, %101 : vector<8x256xf32>
    %103 = arith.mulf %102, %102 : vector<8x256xf32>
    %cst_51 = arith.constant dense<0.000000e+00> : vector<256xf32>
    %104 = vector.multi_reduction <add>, %103, %cst_51 [0] : vector<8x256xf32> to vector<256xf32>
    %105 = vector.shape_cast %104 : vector<256xf32> to vector<1x256xf32>
    %cst_52 = arith.constant 1.250000e-01 : f32
    %106 = vector.broadcast %cst_52 : f32 to vector<1x256xf32>
    %107 = arith.mulf %105, %106 : vector<1x256xf32>
    %c3_53 = arith.constant 3 : index
    %c0_54 = arith.constant 0 : index
    %c0_55 = arith.constant 0 : index
    %108 = vector.load %arg2[%c3_53, %c0_54, %c0_55] : memref<5x2x256xf32, #tpu.memory_space<vmem>>, vector<1x1x256xf32>
    %109 = vector.shape_cast %108 : vector<1x1x256xf32> to vector<1x256xf32>
    %cst_56 = arith.constant 9.99999974E-6 : f32
    %110 = vector.broadcast %cst_56 : f32 to vector<1x256xf32>
    %111 = arith.addf %107, %110 : vector<1x256xf32>
    %112 = math.rsqrt %111 : vector<1x256xf32>
    %113 = arith.mulf %109, %112 : vector<1x256xf32>
    %c3_57 = arith.constant 3 : index
    %c1_58 = arith.constant 1 : index
    %c0_59 = arith.constant 0 : index
    %114 = vector.load %arg2[%c3_57, %c1_58, %c0_59] : memref<5x2x256xf32, #tpu.memory_space<vmem>>, vector<1x1x256xf32>
    %115 = vector.shape_cast %114 : vector<1x1x256xf32> to vector<1x256xf32>
    %116 = arith.mulf %100, %113 : vector<1x256xf32>
    %117 = arith.subf %115, %116 : vector<1x256xf32>
    %118 = vector.broadcast %113 : vector<1x256xf32> to vector<8x256xf32>
    %119 = arith.mulf %96, %118 : vector<8x256xf32>
    %120 = vector.broadcast %117 : vector<1x256xf32> to vector<8x256xf32>
    %121 = arith.addf %119, %120 : vector<8x256xf32>
    %cst_60 = arith.constant 0.000000e+00 : f32
    %122 = vector.broadcast %cst_60 : f32 to vector<8x256xf32>
    %123 = arith.maximumf %121, %122 : vector<8x256xf32>
    %124 = arith.truncf %123 : vector<8x256xf32> to vector<8x256xbf16>
    %c4 = arith.constant 4 : index
    %c0_61 = arith.constant 0 : index
    %c0_62 = arith.constant 0 : index
    %125 = vector.load %arg1[%c4, %c0_61, %c0_62] : memref<5x256x256xbf16, #tpu.memory_space<vmem>>, vector<1x256x256xbf16>
    %126 = vector.shape_cast %125 : vector<1x256x256xbf16> to vector<256x256xbf16>
    %cst_63 = arith.constant dense<0.000000e+00> : vector<8x256xf32>
    %127 = tpu.matmul %124, %126, %cst_63 {dimension_numbers = #tpu.dot_dimension_numbers<[1], [0], [0], [1], [0, 0, 1, 1], [], []>} : vector<8x256xbf16>, vector<256x256xbf16>, vector<8x256xf32> -> vector<8x256xf32>
    %cst_64 = arith.constant dense<0.000000e+00> : vector<256xf32>
    %128 = vector.multi_reduction <add>, %127, %cst_64 [0] : vector<8x256xf32> to vector<256xf32>
    %129 = vector.shape_cast %128 : vector<256xf32> to vector<1x256xf32>
    %cst_65 = arith.constant 1.250000e-01 : f32
    %130 = vector.broadcast %cst_65 : f32 to vector<1x256xf32>
    %131 = arith.mulf %129, %130 : vector<1x256xf32>
    %132 = vector.broadcast %131 : vector<1x256xf32> to vector<8x256xf32>
    %133 = arith.subf %127, %132 : vector<8x256xf32>
    %134 = arith.mulf %133, %133 : vector<8x256xf32>
    %cst_66 = arith.constant dense<0.000000e+00> : vector<256xf32>
    %135 = vector.multi_reduction <add>, %134, %cst_66 [0] : vector<8x256xf32> to vector<256xf32>
    %136 = vector.shape_cast %135 : vector<256xf32> to vector<1x256xf32>
    %cst_67 = arith.constant 1.250000e-01 : f32
    %137 = vector.broadcast %cst_67 : f32 to vector<1x256xf32>
    %138 = arith.mulf %136, %137 : vector<1x256xf32>
    %c4_68 = arith.constant 4 : index
    %c0_69 = arith.constant 0 : index
    %c0_70 = arith.constant 0 : index
    %139 = vector.load %arg2[%c4_68, %c0_69, %c0_70] : memref<5x2x256xf32, #tpu.memory_space<vmem>>, vector<1x1x256xf32>
    %140 = vector.shape_cast %139 : vector<1x1x256xf32> to vector<1x256xf32>
    %cst_71 = arith.constant 9.99999974E-6 : f32
    %141 = vector.broadcast %cst_71 : f32 to vector<1x256xf32>
    %142 = arith.addf %138, %141 : vector<1x256xf32>
    %143 = math.rsqrt %142 : vector<1x256xf32>
    %144 = arith.mulf %140, %143 : vector<1x256xf32>
    %c4_72 = arith.constant 4 : index
    %c1_73 = arith.constant 1 : index
    %c0_74 = arith.constant 0 : index
    %145 = vector.load %arg2[%c4_72, %c1_73, %c0_74] : memref<5x2x256xf32, #tpu.memory_space<vmem>>, vector<1x1x256xf32>
    %146 = vector.shape_cast %145 : vector<1x1x256xf32> to vector<1x256xf32>
    %147 = arith.mulf %131, %144 : vector<1x256xf32>
    %148 = arith.subf %146, %147 : vector<1x256xf32>
    %149 = vector.broadcast %144 : vector<1x256xf32> to vector<8x256xf32>
    %150 = arith.mulf %127, %149 : vector<8x256xf32>
    %151 = vector.broadcast %148 : vector<1x256xf32> to vector<8x256xf32>
    %152 = arith.addf %150, %151 : vector<8x256xf32>
    %cst_75 = arith.constant 0.000000e+00 : f32
    %153 = vector.broadcast %cst_75 : f32 to vector<8x256xf32>
    %154 = arith.maximumf %152, %153 : vector<8x256xf32>
    %155 = arith.truncf %154 : vector<8x256xf32> to vector<8x256xbf16>
    %c0_76 = arith.constant 0 : index
    %c0_77 = arith.constant 0 : index
    %156 = vector.load %arg3[%c0_76, %c0_77] : memref<256x128xbf16, #tpu.memory_space<vmem>>, vector<256x128xbf16>
    %cst_78 = arith.constant dense<0.000000e+00> : vector<8x128xf32>
    %157 = tpu.matmul %155, %156, %cst_78 {dimension_numbers = #tpu.dot_dimension_numbers<[1], [0], [0], [1], [0, 0, 1, 1], [], []>} : vector<8x256xbf16>, vector<256x128xbf16>, vector<8x128xf32> -> vector<8x128xf32>
    %c0_79 = arith.constant 0 : index
    %c0_80 = arith.constant 0 : index
    %158 = vector.load %arg4[%c0_79, %c0_80] : memref<1x128xf32, #tpu.memory_space<vmem>>, vector<1x128xf32>
    %159 = vector.broadcast %158 : vector<1x128xf32> to vector<8x128xf32>
    %160 = arith.addf %157, %159 : vector<8x128xf32>
    %c0_81 = arith.constant 0 : index
    %c0_82 = arith.constant 0 : index
    %161 = vector.load %arg5[%c0_81, %c0_82] : memref<8x128xf32, #tpu.memory_space<vmem>>, vector<8x128xf32>
    tpu.vector_store %arg5[%c0_81, %c0_82], %160 {strides = array<i32>} : memref<8x128xf32, #tpu.memory_space<vmem>>, vector<8x128xf32>,
    return
  }
}

</mosaic_0001>

<llo_original>
// kernel: tpu_custom_call.1
$region0: #{tpu_custom_call.1}
  #allocation0 [shape = 'u32[]', space=smem, size = 0x4, offset = 0x4, fixed_abs, tag = 'smem constant byte address 0x4 - core index']
  #allocation1 [shape = 'u32[144,128]{1,0:T(1,128)}', space=vmem, size = 0x12000, scoped, tag = 'internal scratch']
  %s0 = inlined_call_operand.hbm [shape: bf16[8,256], index: 0, kind: input, shape index: {}]
  %s1 = inlined_call_operand.hbm [shape: bf16[5,256,256], index: 1, kind: input, shape index: {}]
  %s2 = inlined_call_operand.hbm [shape: f32[5,2,256], index: 2, kind: input, shape index: {}]
  %s3 = inlined_call_operand.hbm [shape: bf16[256,128], index: 3, kind: input, shape index: {}]
  %s4 = inlined_call_operand.vmem [shape: f32[1,128], index: 4, kind: input, shape index: {}]
  %s5 = inlined_call_operand.hbm [shape: f32[8,128], index: 5, kind: output, shape index: {}]
  %s6 = sld [smem:[#allocation0]]
  $region46: #{tpu_custom_call.1} parent=0
    _
  %s8 = ssub.s32 1, %s6
  %s9 = scalar_select 0, %s8, %s6
  $region1: #{tpu_custom_call.1} parent=0
    #allocation2 [shape = 'u8[4096]{0}', space=vmem, size = 0x1000, scoped, tag = 'input window, operand 0, single buffered']
    #allocation3 [shape = 's32[1]{0}', space=sflag, size = 0x4, scoped, tag = 'scoped memory for tpu_custom_call.1']
    #allocation4 [shape = 's32[1]{0}', space=sflag, size = 0x4, scoped, tag = 'scoped memory for tpu_custom_call.1']
    #allocation5 [shape = 'u8[655360]{0}', space=vmem, size = 0xa0000, scoped, tag = 'input window, operand 1, single buffered']
    #allocation6 [shape = 's32[1]{0}', space=sflag, size = 0x4, scoped, tag = 'scoped memory for tpu_custom_call.1']
    #allocation7 [shape = 'u8[10240]{0}', space=vmem, size = 0x2800, scoped, tag = 'input window, operand 2, single buffered']
    #allocation8 [shape = 'u8[65536]{0}', space=vmem, size = 0x10000, scoped, tag = 'input window, operand 3, single buffered']
    #allocation9 [shape = 's32[1]{0}', space=sflag, size = 0x4, scoped, tag = 'scoped memory for tpu_custom_call.1']
    #allocation10 [shape = 'u8[4096]{0}', space=vmem, size = 0x1000, scoped, tag = 'output window, operand 0, single buffered']
    %10 = vsyncpa [#allocation3], 0
    %11 = vsyncpa [#allocation6], 0
    %12 = vsyncpa [#allocation9], 0
    %13 = vsyncpa [#allocation4], 0
    // Predicated region
    $region2: #{tpu_custom_call.1} parent=1 // pred_check
      _
    $region3: #{tpu_custom_call.1} parent=1 // pred_check_branch
      %15 = sbr.rel (0) target = $region5
    $region4: #{tpu_custom_call.1} parent=1 // pred_region
      %s17 = ssub.s32 128, 128
      %18 = vsyncadd [#allocation3], %s17
      %s20 = sshll.u32 [#allocation2], 4
      %s21 = int_to_ptr.vmem [resolvable:$true] %s20
      %23 = dma.hbm_to_vmem [thread:$0]  %s0, 128, %s21, [#allocation3]
    $region5: #{tpu_custom_call.1} parent=1 // pred_fallthru
      _
    // Predicated region
    $region6: #{tpu_custom_call.1} parent=1 // pred_check
      _
    $region7: #{tpu_custom_call.1} parent=1 // pred_check_branch
      %25 = sbr.rel (0) target = $region9
    $region8: #{tpu_custom_call.1} parent=1 // pred_region
      %s27 = ssub.s32 20480, 20480
      %28 = vsyncadd [#allocation6], %s27
      %s29 = sshll.u32 [#allocation5], 4
      %s30 = int_to_ptr.vmem [resolvable:$true] %s29
      %35 = dma.hbm_to_vmem [thread:$0]  %s1, 20480, %s30, [#allocation6], 128, 128, 8
    $region9: #{tpu_custom_call.1} parent=1 // pred_fallthru
      _
    // Predicated region
    $region10: #{tpu_custom_call.1} parent=1 // pred_check
      _
    $region11: #{tpu_custom_call.1} parent=1 // pred_check_branch
      %37 = sbr.rel (0) target = $region13
    $region12: #{tpu_custom_call.1} parent=1 // pred_region
      %s39 = ssub.s32 320, 320
      %40 = vsyncadd [#allocation6], %s39
      %s41 = sshll.u32 [#allocation7], 4
      %s42 = int_to_ptr.vmem [resolvable:$true] %s41
      %47 = dma.hbm_to_vmem [thread:$0]  %s2, 320, %s42, [#allocation6], 64, 64, 4
    $region13: #{tpu_custom_call.1} parent=1 // pred_fallthru
      _
    // Predicated region
    $region14: #{tpu_custom_call.1} parent=1 // pred_check
      _
    $region15: #{tpu_custom_call.1} parent=1 // pred_check_branch
      %49 = sbr.rel (0) target = $region17
    $region16: #{tpu_custom_call.1} parent=1 // pred_region
      %s51 = ssub.s32 2048, 2048
      %52 = vsyncadd [#allocation9], %s51
      %s53 = sshll.u32 [#allocation8], 4
      %s54 = int_to_ptr.vmem [resolvable:$true] %s53
      %59 = dma.hbm_to_vmem [thread:$0]  %s3, 2048, %s54, [#allocation9], 64, 64, 4
    $region17: #{tpu_custom_call.1} parent=1 // pred_fallthru
      _
    // Predicated region
    $region18: #{tpu_custom_call.1} parent=1 // pred_check
      _
    $region19: #{tpu_custom_call.1} parent=1 // pred_check_branch
      %61 = sbr.rel (0) target = $region21
    $region20: #{tpu_custom_call.1} parent=1 // pred_region
      _
    $region21: #{tpu_custom_call.1} parent=1 // pred_fallthru
      _
    // Predicated region
    $region22: #{tpu_custom_call.1} parent=1 // pred_check
      _
    $region23: #{tpu_custom_call.1} parent=1 // pred_check_branch
      %63 = sbr.rel (0) target = $region25
    $region24: #{tpu_custom_call.1} parent=1 // pred_region
      %64 = dma.done [#allocation3], 128
    $region25: #{tpu_custom_call.1} parent=1 // pred_fallthru
      _
    // Predicated region
    $region26: #{tpu_custom_call.1} parent=1 // pred_check
      _
    $region27: #{tpu_custom_call.1} parent=1 // pred_check_branch
      %66 = sbr.rel (0) target = $region29
    $region28: #{tpu_custom_call.1} parent=1 // pred_region
      %67 = dma.done [#allocation6], 20480
    $region29: #{tpu_custom_call.1} parent=1 // pred_fallthru
      _
    // Predicated region
    $region30: #{tpu_custom_call.1} parent=1 // pred_check
      _
    $region31: #{tpu_custom_call.1} parent=1 // pred_check_branch
      %69 = sbr.rel (0) target = $region33
    $region32: #{tpu_custom_call.1} parent=1 // pred_region
      %70 = dma.done [#allocation6], 320
    $region33: #{tpu_custom_call.1} parent=1 // pred_fallthru
      _
    // Predicated region
    $region34: #{tpu_custom_call.1} parent=1 // pred_check
      _
    $region35: #{tpu_custom_call.1} parent=1 // pred_check_branch
      %72 = sbr.rel (0) target = $region37
    $region36: #{tpu_custom_call.1} parent=1 // pred_region
      %73 = dma.done [#allocation9], 2048
    $region37: #{tpu_custom_call.1} parent=1 // pred_fallthru
      _
    %v75 = vld [vmem:[#allocation2] sm:$0xff]
    %v76 = vld [vmem:[#allocation5] sm:$0xff]
    %v77 = vld [vmem:[#allocation5 + $0x8] sm:$0xff]
    %v78 = vld [vmem:[#allocation5 + $0x10] sm:$0xff]
    %v79 = vld [vmem:[#allocation5 + $0x18] sm:$0xff]
    %v80 = vld [vmem:[#allocation5 + $0x20] sm:$0xff]
    %v81 = vld [vmem:[#allocation5 + $0x28] sm:$0xff]
    %v82 = vld [vmem:[#allocation5 + $0x30] sm:$0xff]
    %v83 = vld [vmem:[#allocation5 + $0x38] sm:$0xff]
    %v84 = vld [vmem:[#allocation5 + $0x40] sm:$0xff]
    %v85 = vld [vmem:[#allocation5 + $0x48] sm:$0xff]
    %v86 = vld [vmem:[#allocation5 + $0x50] sm:$0xff]
    %v87 = vld [vmem:[#allocation5 + $0x58] sm:$0xff]
    %v88 = vld [vmem:[#allocation5 + $0x60] sm:$0xff]
    %v89 = vld [vmem:[#allocation5 + $0x68] sm:$0xff]
    %v90 = vld [vmem:[#allocation5 + $0x70] sm:$0xff]
    %v91 = vld [vmem:[#allocation5 + $0x78] sm:$0xff]
    %v92 = vld [vmem:[#allocation5 + $0x80] sm:$0xff]
    %v93 = vld [vmem:[#allocation5 + $0x88] sm:$0xff]
    %v94 = vld [vmem:[#allocation5 + $0x90] sm:$0xff]
    %v95 = vld [vmem:[#allocation5 + $0x98] sm:$0xff]
    %v96 = vld [vmem:[#allocation5 + $0xa0] sm:$0xff]
    %v97 = vld [vmem:[#allocation5 + $0xa8] sm:$0xff]
    %v98 = vld [vmem:[#allocation5 + $0xb0] sm:$0xff]
    %v99 = vld [vmem:[#allocation5 + $0xb8] sm:$0xff]
    %v100 = vld [vmem:[#allocation5 + $0xc0] sm:$0xff]
    %v101 = vld [vmem:[#allocation5 + $0xc8] sm:$0xff]
    %v102 = vld [vmem:[#allocation5 + $0xd0] sm:$0xff]
    %v103 = vld [vmem:[#allocation5 + $0xd8] sm:$0xff]
    %v104 = vld [vmem:[#allocation5 + $0xe0] sm:$0xff]
    %v105 = vld [vmem:[#allocation5 + $0xe8] sm:$0xff]
    %v106 = vld [vmem:[#allocation5 + $0xf0] sm:$0xff]
    %v107 = vld [vmem:[#allocation5 + $0xf8] sm:$0xff]
    %v109 = vunpack.c.l.b16 %v75
    %v110 = vunpack.c.h.b16 %v75
    %v111 = vpack.c.b16 %v109, %v109
    %v112 = vpack.c.b16 %v110, %v110
    %v147 = vunpack.c.l.b16 %v76
    %v148 = vunpack.c.h.b16 %v76
    %v149 = vunpack.c.l.b16 %v77
    %v150 = vunpack.c.h.b16 %v77
    %v151 = vunpack.c.l.b16 %v78
    %v152 = vunpack.c.h.b16 %v78
    %v153 = vunpack.c.l.b16 %v79
    %v154 = vunpack.c.h.b16 %v79
    %v155 = vunpack.c.l.b16 %v80
    %v156 = vunpack.c.h.b16 %v80
    %v157 = vunpack.c.l.b16 %v81
    %v158 = vunpack.c.h.b16 %v81
    %v159 = vunpack.c.l.b16 %v82
    %v160 = vunpack.c.h.b16 %v82
    %v161 = vunpack.c.l.b16 %v83
    %v162 = vunpack.c.h.b16 %v83
    %v163 = vunpack.c.l.b16 %v84
    %v164 = vunpack.c.h.b16 %v84
    %v165 = vunpack.c.l.b16 %v85
    %v166 = vunpack.c.h.b16 %v85
    %v167 = vunpack.c.l.b16 %v86
    %v168 = vunpack.c.h.b16 %v86
    %v169 = vunpack.c.l.b16 %v87
    %v170 = vunpack.c.h.b16 %v87
    %v171 = vunpack.c.l.b16 %v88
    %v172 = vunpack.c.h.b16 %v88
    %v173 = vunpack.c.l.b16 %v89
    %v174 = vunpack.c.h.b16 %v89
    %v175 = vunpack.c.l.b16 %v90
    %v176 = vunpack.c.h.b16 %v90
    %v177 = vunpack.c.l.b16 %v91
    %v178 = vunpack.c.h.b16 %v91
    %v179 = vunpack.c.l.b16 %v92
    %v180 = vunpack.c.h.b16 %v92
    %v181 = vunpack.c.l.b16 %v93
    %v182 = vunpack.c.h.b16 %v93
    %v183 = vunpack.c.l.b16 %v94
    %v184 = vunpack.c.h.b16 %v94
    %v185 = vunpack.c.l.b16 %v95
    %v186 = vunpack.c.h.b16 %v95
    %v187 = vunpack.c.l.b16 %v96
    %v188 = vunpack.c.h.b16 %v96
    %v189 = vunpack.c.l.b16 %v97
    %v190 = vunpack.c.h.b16 %v97
    %v191 = vunpack.c.l.b16 %v98
    %v192 = vunpack.c.h.b16 %v98
    %v193 = vunpack.c.l.b16 %v99
    %v194 = vunpack.c.h.b16 %v99
    %v195 = vunpack.c.l.b16 %v100
    %v196 = vunpack.c.h.b16 %v100
    %v197 = vunpack.c.l.b16 %v101
    %v198 = vunpack.c.h.b16 %v101
    %v199 = vunpack.c.l.b16 %v102
    %v200 = vunpack.c.h.b16 %v102
    %v201 = vunpack.c.l.b16 %v103
    %v202 = vunpack.c.h.b16 %v103
    %v203 = vunpack.c.l.b16 %v104
    %v204 = vunpack.c.h.b16 %v104
    %v205 = vunpack.c.l.b16 %v105
    %v206 = vunpack.c.h.b16 %v105
    %v207 = vunpack.c.l.b16 %v106
    %v208 = vunpack.c.h.b16 %v106
    %v209 = vunpack.c.l.b16 %v107
    %v210 = vunpack.c.h.b16 %v107
    %v211 = vpack.c.b16 %v149, %v147
    %v212 = vpack.c.b16 %v150, %v148
    %v213 = vpack.c.b16 %v153, %v151
    %v214 = vpack.c.b16 %v154, %v152
    %v215 = vpack.c.b16 %v157, %v155
    %v216 = vpack.c.b16 %v158, %v156
    %v217 = vpack.c.b16 %v161, %v159
    %v218 = vpack.c.b16 %v162, %v160
    %v219 = vpack.c.b16 %v165, %v163
    %v220 = vpack.c.b16 %v166, %v164
    %v221 = vpack.c.b16 %v169, %v167
    %v222 = vpack.c.b16 %v170, %v168
    %v223 = vpack.c.b16 %v173, %v171
    %v224 = vpack.c.b16 %v174, %v172
    %v225 = vpack.c.b16 %v177, %v175
    %v226 = vpack.c.b16 %v178, %v176
    %v227 = vpack.c.b16 %v181, %v179
    %v228 = vpack.c.b16 %v182, %v180
    %v229 = vpack.c.b16 %v185, %v183
    %v230 = vpack.c.b16 %v186, %v184
    %v231 = vpack.c.b16 %v189, %v187
    %v232 = vpack.c.b16 %v190, %v188
    %v233 = vpack.c.b16 %v193, %v191
    %v234 = vpack.c.b16 %v194, %v192
    %v235 = vpack.c.b16 %v197, %v195
    %v236 = vpack.c.b16 %v198, %v196
    %v237 = vpack.c.b16 %v201, %v199
    %v238 = vpack.c.b16 %v202, %v200
    %v239 = vpack.c.b16 %v205, %v203
    %v240 = vpack.c.b16 %v206, %v204
    %v241 = vpack.c.b16 %v209, %v207
    %v242 = vpack.c.b16 %v210, %v208
    %275 = vmatprep.subr.bf16.mxu0 %v212
    %276 = vmatpush1.bf16.msra.mxu0 %v211
    %277 = vmatprep.subr.bf16.mxu0 %v214
    %278 = vmatpush1.bf16.msra.mxu0 %v213
    %279 = vmatprep.subr.bf16.mxu0 %v216
    %280 = vmatpush1.bf16.msra.mxu0 %v215
    %281 = vmatprep.subr.bf16.mxu0 %v218
    %282 = vmatpush1.bf16.msra.mxu0 %v217
    %283 = vmatprep.subr.bf16.mxu0 %v220
    %284 = vmatpush1.bf16.msra.mxu0 %v219
    %285 = vmatprep.subr.bf16.mxu0 %v222
    %286 = vmatpush1.bf16.msra.mxu0 %v221
    %287 = vmatprep.subr.bf16.mxu0 %v224
    %288 = vmatpush1.bf16.msra.mxu0 %v223
    %289 = vmatprep.subr.bf16.mxu0 %v226
    %290 = vmatpush1.bf16.msra.mxu0 %v225
    %291 = vmatprep.subr.bf16.mxu0 %v228
    %292 = vmatpush1.bf16.msra.mxu0 %v227
    %293 = vmatprep.subr.bf16.mxu0 %v230
    %294 = vmatpush1.bf16.msra.mxu0 %v229
    %295 = vmatprep.subr.bf16.mxu0 %v232
    %296 = vmatpush1.bf16.msra.mxu0 %v231
    %297 = vmatprep.subr.bf16.mxu0 %v234
    %298 = vmatpush1.bf16.msra.mxu0 %v233
    %299 = vmatprep.subr.bf16.mxu0 %v236
    %300 = vmatpush1.bf16.msra.mxu0 %v235
    %301 = vmatprep.subr.bf16.mxu0 %v238
    %302 = vmatpush1.bf16.msra.mxu0 %v237
    %303 = vmatprep.subr.bf16.mxu0 %v240
    %304 = vmatpush1.bf16.msra.mxu0 %v239
    %305 = vmatprep.subr.bf16.mxu0 %v242
    %306 = vmatpush1.bf16.msra.mxu0 %v241
    %307 = vmatprep.mubr.bf16.mxu0 %v112
    %308 = vmatmul.mubr.bf16.gmra.mrb[0].mxu0 %v111
    %v309 = vpop.f32.mrb[0].mxu0
    %v310 = vadd.f32 0.0, %v309
    %v311 = vpop.f32.mrb[0].mxu0
    %v312 = vadd.f32 0.0, %v311
    %v313 = vpop.f32.mrb[0].mxu0
    %v314 = vpop.f32.mrb[0].mxu0
    %315 = vdwg.mxu0
    %v316 = vrot.slane %v310, 4
    %v317 = vadd.f32 %v310, %v316
    %v318 = vrot.slane %v317, 2
    %v319 = vadd.f32 %v317, %v318
    %v320 = vrot.slane %v319, 1
    %v321 = vadd.f32 %v319, %v320
    %v322 = vrot.slane %v312, 4
    %v323 = vadd.f32 %v312, %v322
    %v324 = vrot.slane %v323, 2
    %v325 = vadd.f32 %v323, %v324
    %v326 = vrot.slane %v325, 1
    %v327 = vadd.f32 %v325, %v326
    %v328 = vmul.f32 %v321, 0.125
    %v329 = vmul.f32 %v327, 0.125
    %v330 = vsub.f32 %v310, %v328
    %v331 = vsub.f32 %v312, %v329
    %v332 = vmul.f32 %v330, %v330
    %v333 = vmul.f32 %v331, %v331
    %v334 = vrot.slane %v332, 4
    %v335 = vadd.f32 %v332, %v334
    %v336 = vrot.slane %v335, 2
    %v337 = vadd.f32 %v335, %v336
    %v338 = vrot.slane %v337, 1
    %v339 = vadd.f32 %v337, %v338
    %v340 = vrot.slane %v333, 4
    %v341 = vadd.f32 %v333, %v340
    %v342 = vrot.slane %v341, 2
    %v343 = vadd.f32 %v341, %v342
    %v344 = vrot.slane %v343, 1
    %v345 = vadd.f32 %v343, %v344
    %v346 = vmul.f32 %v339, 0.125
    %v347 = vmul.f32 %v345, 0.125
    %v348 = vld [vmem:[#allocation7] ss:$2 sm:$0x3]
    %v349 = vadd.f32 %v346, 1e-05
    %v350 = vadd.f32 %v347, 1e-05
    %v351 = vrsqrt.pop %v349
    %v352 = vrsqrt.pop %v350
    %v355 = vcombine.low %v351, %v352
    %v357 = vunpack.c.l.s4 1966171168
    %v358 = vunpack.c.0.s8 %v357
    %v359 = vlaneseq
    %v360 = vshrl.u32 %v359, 7
    %v361 = vsub.s32 %v358, %v360
    %v362 = vrot.slane %v355, %v361
    %v364 = vunpack.c.l.s4 1966171168
    %v365 = vunpack.c.0.s8 %v364
    %v366 = vlaneseq
    %v367 = vshrl.u32 %v366, 7
    %v368 = vsub.s32 %v365, %v367
    %v369 = vrot.slane %v362, %v368
    %v371 = vmul.f32 %v348, %v369
    %s372 = scalar_lea.vmem [#allocation7], 1
    %v373 = vld [vmem:[%s372] ss:$2 sm:$0x3]
    %v375 = vlaneseq
    %v376 = vshrl.u32 %v375, 7
    %v377 = vsub.s32 0, %v376
    %v378 = vrot.slane %v371, %v377
    %v379 = vlaneseq
    %v380 = vshrl.u32 %v379, 7
    %v381 = vsub.s32 1, %v380
    %v382 = vrot.slane %v371, %v381
    %v385 = vmul.f32 %v328, %v378
    %v386 = vmul.f32 %v329, %v382
    %v389 = vcombine.low %v385, %v386
    %v391 = vunpack.c.l.s4 1966171168
    %v392 = vunpack.c.0.s8 %v391
    %v393 = vlaneseq
    %v394 = vshrl.u32 %v393, 7
    %v395 = vsub.s32 %v392, %v394
    %v396 = vrot.slane %v389, %v395
    %v398 = vunpack.c.l.s4 1966171168
    %v399 = vunpack.c.0.s8 %v398
    %v400 = vlaneseq
    %v401 = vshrl.u32 %v400, 7
    %v402 = vsub.s32 %v399, %v401
    %v403 = vrot.slane %v396, %v402
    %v405 = vsub.f32 %v373, %v403
    %v406 = vmul.f32 %v310, %v378
    %v407 = vmul.f32 %v312, %v382
    %v409 = vlaneseq
    %v410 = vshrl.u32 %v409, 7
    %v411 = vsub.s32 0, %v410
    %v412 = vrot.slane %v405, %v411
    %v413 = vlaneseq
    %v414 = vshrl.u32 %v413, 7
    %v415 = vsub.s32 1, %v414
    %v416 = vrot.slane %v405, %v415
    %v419 = vadd.f32 %v406, %v412
    %v420 = vadd.f32 %v407, %v416
    %v421 = vmax.f32 %v419, 0.0
    %v422 = vmax.f32 %v420, 0.0
    %v423 = vpack.c.bf16 %v421, %v421
    %v424 = vpack.c.bf16 %v422, %v422
    %s425 = scalar_lea.vmem [#allocation5], 256
    %v426 = vld [vmem:[%s425] sm:$0xff]
    %v427 = vld [vmem:[%s425 + $0x8] sm:$0xff]
    %v428 = vld [vmem:[%s425 + $0x10] sm:$0xff]
    %v429 = vld [vmem:[%s425 + $0x18] sm:$0xff]
    %v430 = vld [vmem:[%s425 + $0x20] sm:$0xff]
    %v431 = vld [vmem:[%s425 + $0x28] sm:$0xff]
    %v432 = vld [vmem:[%s425 + $0x30] sm:$0xff]
    %v433 = vld [vmem:[%s425 + $0x38] sm:$0xff]
    %v434 = vld [vmem:[%s425 + $0x40] sm:$0xff]
    %v435 = vld [vmem:[%s425 + $0x48] sm:$0xff]
    %v436 = vld [vmem:[%s425 + $0x50] sm:$0xff]
    %v437 = vld [vmem:[%s425 + $0x58] sm:$0xff]
    %v438 = vld [vmem:[%s425 + $0x60] sm:$0xff]
    %v439 = vld [vmem:[%s425 + $0x68] sm:$0xff]
    %v440 = vld [vmem:[%s425 + $0x70] sm:$0xff]
    %v441 = vld [vmem:[%s425 + $0x78] sm:$0xff]
    %v442 = vld [vmem:[%s425 + $0x80] sm:$0xff]
    %v443 = vld [vmem:[%s425 + $0x88] sm:$0xff]
    %v444 = vld [vmem:[%s425 + $0x90] sm:$0xff]
    %v445 = vld [vmem:[%s425 + $0x98] sm:$0xff]
    %v446 = vld [vmem:[%s425 + $0xa0] sm:$0xff]
    %v447 = vld [vmem:[%s425 + $0xa8] sm:$0xff]
    %v448 = vld [vmem:[%s425 + $0xb0] sm:$0xff]
    %v449 = vld [vmem:[%s425 + $0xb8] sm:$0xff]
    %v450 = vld [vmem:[%s425 + $0xc0] sm:$0xff]
    %v451 = vld [vmem:[%s425 + $0xc8] sm:$0xff]
    %v452 = vld [vmem:[%s425 + $0xd0] sm:$0xff]
    %v453 = vld [vmem:[%s425 + $0xd8] sm:$0xff]
    %v454 = vld [vmem:[%s425 + $0xe0] sm:$0xff]
    %v455 = vld [vmem:[%s425 + $0xe8] sm:$0xff]
    %v456 = vld [vmem:[%s425 + $0xf0] sm:$0xff]
    %v457 = vld [vmem:[%s425 + $0xf8] sm:$0xff]
    %v490 = vunpack.c.l.b16 %v426
    %v491 = vunpack.c.h.b16 %v426
    %v492 = vunpack.c.l.b16 %v427
    %v493 = vunpack.c.h.b16 %v427
    %v494 = vunpack.c.l.b16 %v428
    %v495 = vunpack.c.h.b16 %v428
    %v496 = vunpack.c.l.b16 %v429
    %v497 = vunpack.c.h.b16 %v429
    %v498 = vunpack.c.l.b16 %v430
    %v499 = vunpack.c.h.b16 %v430
    %v500 = vunpack.c.l.b16 %v431
    %v501 = vunpack.c.h.b16 %v431
    %v502 = vunpack.c.l.b16 %v432
    %v503 = vunpack.c.h.b16 %v432
    %v504 = vunpack.c.l.b16 %v433
    %v505 = vunpack.c.h.b16 %v433
    %v506 = vunpack.c.l.b16 %v434
    %v507 = vunpack.c.h.b16 %v434
    %v508 = vunpack.c.l.b16 %v435
    %v509 = vunpack.c.h.b16 %v435
    %v510 = vunpack.c.l.b16 %v436
    %v511 = vunpack.c.h.b16 %v436
    %v512 = vunpack.c.l.b16 %v437
    %v513 = vunpack.c.h.b16 %v437
    %v514 = vunpack.c.l.b16 %v438
    %v515 = vunpack.c.h.b16 %v438
    %v516 = vunpack.c.l.b16 %v439
    %v517 = vunpack.c.h.b16 %v439
    %v518 = vunpack.c.l.b16 %v440
    %v519 = vunpack.c.h.b16 %v440
    %v520 = vunpack.c.l.b16 %v441
    %v521 = vunpack.c.h.b16 %v441
    %v522 = vunpack.c.l.b16 %v442
    %v523 = vunpack.c.h.b16 %v442
    %v524 = vunpack.c.l.b16 %v443
    %v525 = vunpack.c.h.b16 %v443
    %v526 = vunpack.c.l.b16 %v444
    %v527 = vunpack.c.h.b16 %v444
    %v528 = vunpack.c.l.b16 %v445
    %v529 = vunpack.c.h.b16 %v445
    %v530 = vunpack.c.l.b16 %v446
    %v531 = vunpack.c.h.b16 %v446
    %v532 = vunpack.c.l.b16 %v447
    %v533 = vunpack.c.h.b16 %v447
    %v534 = vunpack.c.l.b16 %v448
    %v535 = vunpack.c.h.b16 %v448
    %v536 = vunpack.c.l.b16 %v449
    %v537 = vunpack.c.h.b16 %v449
    %v538 = vunpack.c.l.b16 %v450
    %v539 = vunpack.c.h.b16 %v450
    %v540 = vunpack.c.l.b16 %v451
    %v541 = vunpack.c.h.b16 %v451
    %v542 = vunpack.c.l.b16 %v452
    %v543 = vunpack.c.h.b16 %v452
    %v544 = vunpack.c.l.b16 %v453
    %v545 = vunpack.c.h.b16 %v453
    %v546 = vunpack.c.l.b16 %v454
    %v547 = vunpack.c.h.b16 %v454
    %v548 = vunpack.c.l.b16 %v455
    %v549 = vunpack.c.h.b16 %v455
    %v550 = vunpack.c.l.b16 %v456
    %v551 = vunpack.c.h.b16 %v456
    %v552 = vunpack.c.l.b16 %v457
    %v553 = vunpack.c.h.b16 %v457
    %v554 = vpack.c.b16 %v492, %v490
    %v555 = vpack.c.b16 %v493, %v491
    %v556 = vpack.c.b16 %v496, %v494
    %v557 = vpack.c.b16 %v497, %v495
    %v558 = vpack.c.b16 %v500, %v498
    %v559 = vpack.c.b16 %v501, %v499
    %v560 = vpack.c.b16 %v504, %v502
    %v561 = vpack.c.b16 %v505, %v503
    %v562 = vpack.c.b16 %v508, %v506
    %v563 = vpack.c.b16 %v509, %v507
    %v564 = vpack.c.b16 %v512, %v510
    %v565 = vpack.c.b16 %v513, %v511
    %v566 = vpack.c.b16 %v516, %v514
    %v567 = vpack.c.b16 %v517, %v515
    %v568 = vpack.c.b16 %v520, %v518
    %v569 = vpack.c.b16 %v521, %v519
    %v570 = vpack.c.b16 %v524, %v522
    %v571 = vpack.c.b16 %v525, %v523
    %v572 = vpack.c.b16 %v528, %v526
    %v573 = vpack.c.b16 %v529, %v527
    %v574 = vpack.c.b16 %v532, %v530
    %v575 = vpack.c.b16 %v533, %v531
    %v576 = vpack.c.b16 %v536, %v534
    %v577 = vpack.c.b16 %v537, %v535
    %v578 = vpack.c.b16 %v540, %v538
    %v579 = vpack.c.b16 %v541, %v539
    %v580 = vpack.c.b16 %v544, %v542
    %v581 = vpack.c.b16 %v545, %v543
    %v582 = vpack.c.b16 %v548, %v546
    %v583 = vpack.c.b16 %v549, %v547
    %v584 = vpack.c.b16 %v552, %v550
    %v585 = vpack.c.b16 %v553, %v551
    %618 = vmatprep.subr.bf16.mxu0 %v555
    %619 = vmatpush1.bf16.msra.mxu0 %v554
    %620 = vmatprep.subr.bf16.mxu0 %v557
    %621 = vmatpush1.bf16.msra.mxu0 %v556
    %622 = vmatprep.subr.bf16.mxu0 %v559
    %623 = vmatpush1.bf16.msra.mxu0 %v558
    %624 = vmatprep.subr.bf16.mxu0 %v561
    %625 = vmatpush1.bf16.msra.mxu0 %v560
    %626 = vmatprep.subr.bf16.mxu0 %v563
    %627 = vmatpush1.bf16.msra.mxu0 %v562
    %628 = vmatprep.subr.bf16.mxu0 %v565
    %629 = vmatpush1.bf16.msra.mxu0 %v564
    %630 = vmatprep.subr.bf16.mxu0 %v567
    %631 = vmatpush1.bf16.msra.mxu0 %v566
    %632 = vmatprep.subr.bf16.mxu0 %v569
    %633 = vmatpush1.bf16.msra.mxu0 %v568
    %634 = vmatprep.subr.bf16.mxu0 %v571
    %635 = vmatpush1.bf16.msra.mxu0 %v570
    %636 = vmatprep.subr.bf16.mxu0 %v573
    %637 = vmatpush1.bf16.msra.mxu0 %v572
    %638 = vmatprep.subr.bf16.mxu0 %v575
    %639 = vmatpush1.bf16.msra.mxu0 %v574
    %640 = vmatprep.subr.bf16.mxu0 %v577
    %641 = vmatpush1.bf16.msra.mxu0 %v576
    %642 = vmatprep.subr.bf16.mxu0 %v579
    %643 = vmatpush1.bf16.msra.mxu0 %v578
    %644 = vmatprep.subr.bf16.mxu0 %v581
    %645 = vmatpush1.bf16.msra.mxu0 %v580
    %646 = vmatprep.subr.bf16.mxu0 %v583
    %647 = vmatpush1.bf16.msra.mxu0 %v582
    %648 = vmatprep.subr.bf16.mxu0 %v585
    %649 = vmatpush1.bf16.msra.mxu0 %v584
    %650 = vmatprep.mubr.bf16.mxu0 %v424
    %651 = vmatmul.mubr.bf16.gmra.mrb[0].mxu0 %v423
    %v652 = vpop.f32.mrb[0].mxu0
    %v653 = vadd.f32 0.0, %v652
    %v654 = vpop.f32.mrb[0].mxu0
    %v655 = vadd.f32 0.0, %v654
    %v656 = vpop.f32.mrb[0].mxu0
    %v657 = vpop.f32.mrb[0].mxu0
    %658 = vdwg.mxu0
    %v659 = vrot.slane %v653, 4
    %v660 = vadd.f32 %v653, %v659
    %v661 = vrot.slane %v660, 2
    %v662 = vadd.f32 %v660, %v661
    %v663 = vrot.slane %v662, 1
    %v664 = vadd.f32 %v662, %v663
    %v665 = vrot.slane %v655, 4
    %v666 = vadd.f32 %v655, %v665
    %v667 = vrot.slane %v666, 2
    %v668 = vadd.f32 %v666, %v667
    %v669 = vrot.slane %v668, 1
    %v670 = vadd.f32 %v668, %v669
    %v671 = vmul.f32 %v664, 0.125
    %v672 = vmul.f32 %v670, 0.125
    %v673 = vsub.f32 %v653, %v671
    %v674 = vsub.f32 %v655, %v672
    %v675 = vmul.f32 %v673, %v673
    %v676 = vmul.f32 %v674, %v674
    %v677 = vrot.slane %v675, 4
    %v678 = vadd.f32 %v675, %v677
    %v679 = vrot.slane %v678, 2
    %v680 = vadd.f32 %v678, %v679
    %v681 = vrot.slane %v680, 1
    %v682 = vadd.f32 %v680, %v681
    %v683 = vrot.slane %v676, 4
    %v684 = vadd.f32 %v676, %v683
    %v685 = vrot.slane %v684, 2
    %v686 = vadd.f32 %v684, %v685
    %v687 = vrot.slane %v686, 1
    %v688 = vadd.f32 %v686, %v687
    %v689 = vmul.f32 %v682, 0.125
    %v690 = vmul.f32 %v688, 0.125
    %s691 = scalar_lea.vmem [#allocation7], 4
    %v692 = vld [vmem:[%s691] ss:$2 sm:$0x3]
    %v693 = vadd.f32 %v689, 1e-05
    %v694 = vadd.f32 %v690, 1e-05
    %v695 = vrsqrt.pop %v693
    %v696 = vrsqrt.pop %v694
    %v699 = vcombine.low %v695, %v696
    %v701 = vunpack.c.l.s4 1966171168
    %v702 = vunpack.c.0.s8 %v701
    %v703 = vlaneseq
    %v704 = vshrl.u32 %v703, 7
    %v705 = vsub.s32 %v702, %v704
    %v706 = vrot.slane %v699, %v705
    %v708 = vunpack.c.l.s4 1966171168
    %v709 = vunpack.c.0.s8 %v708
    %v710 = vlaneseq
    %v711 = vshrl.u32 %v710, 7
    %v712 = vsub.s32 %v709, %v711
    %v713 = vrot.slane %v706, %v712
    %v715 = vmul.f32 %v692, %v713
    %s716 = scalar_lea.vmem %s691, 1 [#allocation7]
    %v717 = vld [vmem:[%s716] ss:$2 sm:$0x3]
    %v719 = vlaneseq
    %v720 = vshrl.u32 %v719, 7
    %v721 = vsub.s32 0, %v720
    %v722 = vrot.slane %v715, %v721
    %v723 = vlaneseq
    %v724 = vshrl.u32 %v723, 7
    %v725 = vsub.s32 1, %v724
    %v726 = vrot.slane %v715, %v725
    %v729 = vmul.f32 %v671, %v722
    %v730 = vmul.f32 %v672, %v726
    %v733 = vcombine.low %v729, %v730
    %v735 = vunpack.c.l.s4 1966171168
    %v736 = vunpack.c.0.s8 %v735
    %v737 = vlaneseq
    %v738 = vshrl.u32 %v737, 7
    %v739 = vsub.s32 %v736, %v738
    %v740 = vrot.slane %v733, %v739
    %v742 = vunpack.c.l.s4 1966171168
    %v743 = vunpack.c.0.s8 %v742
    %v744 = vlaneseq
    %v745 = vshrl.u32 %v744, 7
    %v746 = vsub.s32 %v743, %v745
    %v747 = vrot.slane %v740, %v746
    %v749 = vsub.f32 %v717, %v747
    %v750 = vmul.f32 %v653, %v722
    %v751 = vmul.f32 %v655, %v726
    %v753 = vlaneseq
    %v754 = vshrl.u32 %v753, 7
    %v755 = vsub.s32 0, %v754
    %v756 = vrot.slane %v749, %v755
    %v757 = vlaneseq
    %v758 = vshrl.u32 %v757, 7
    %v759 = vsub.s32 1, %v758
    %v760 = vrot.slane %v749, %v759
    %v763 = vadd.f32 %v750, %v756
    %v764 = vadd.f32 %v751, %v760
    %v765 = vmax.f32 %v763, 0.0
    %v766 = vmax.f32 %v764, 0.0
    %v767 = vpack.c.bf16 %v765, %v765
    %v768 = vpack.c.bf16 %v766, %v766
    %s769 = scalar_lea.vmem [#allocation5], 512
    %v770 = vld [vmem:[%s769] sm:$0xff]
    %v771 = vld [vmem:[%s769 + $0x8] sm:$0xff]
    %v772 = vld [vmem:[%s769 + $0x10] sm:$0xff]
    %v773 = vld [vmem:[%s769 + $0x18] sm:$0xff]
    %v774 = vld [vmem:[%s769 + $0x20] sm:$0xff]
    %v775 = vld [vmem:[%s769 + $0x28] sm:$0xff]
    %v776 = vld [vmem:[%s769 + $0x30] sm:$0xff]
    %v777 = vld [vmem:[%s769 + $0x38] sm:$0xff]
    %v778 = vld [vmem:[%s769 + $0x40] sm:$0xff]
    %v779 = vld [vmem:[%s769 + $0x48] sm:$0xff]
    %v780 = vld [vmem:[%s769 + $0x50] sm:$0xff]
    %v781 = vld [vmem:[%s769 + $0x58] sm:$0xff]
    %v782 = vld [vmem:[%s769 + $0x60] sm:$0xff]
    %v783 = vld [vmem:[%s769 + $0x68] sm:$0xff]
    %v784 = vld [vmem:[%s769 + $0x70] sm:$0xff]
    %v785 = vld [vmem:[%s769 + $0x78] sm:$0xff]
    %v786 = vld [vmem:[%s769 + $0x80] sm:$0xff]
    %v787 = vld [vmem:[%s769 + $0x88] sm:$0xff]
    %v788 = vld [vmem:[%s769 + $0x90] sm:$0xff]
    %v789 = vld [vmem:[%s769 + $0x98] sm:$0xff]
    %v790 = vld [vmem:[%s769 + $0xa0] sm:$0xff]
    %v791 = vld [vmem:[%s769 + $0xa8] sm:$0xff]
    %v792 = vld [vmem:[%s769 + $0xb0] sm:$0xff]
    %v793 = vld [vmem:[%s769 + $0xb8] sm:$0xff]
    %v794 = vld [vmem:[%s769 + $0xc0] sm:$0xff]
    %v795 = vld [vmem:[%s769 + $0xc8] sm:$0xff]
    %v796 = vld [vmem:[%s769 + $0xd0] sm:$0xff]
    %v797 = vld [vmem:[%s769 + $0xd8] sm:$0xff]
    %v798 = vld [vmem:[%s769 + $0xe0] sm:$0xff]
    %v799 = vld [vmem:[%s769 + $0xe8] sm:$0xff]
    %v800 = vld [vmem:[%s769 + $0xf0] sm:$0xff]
    %v801 = vld [vmem:[%s769 + $0xf8] sm:$0xff]
    %v834 = vunpack.c.l.b16 %v770
    %v835 = vunpack.c.h.b16 %v770
    %v836 = vunpack.c.l.b16 %v771
    %v837 = vunpack.c.h.b16 %v771
    %v838 = vunpack.c.l.b16 %v772
    %v839 = vunpack.c.h.b16 %v772
    %v840 = vunpack.c.l.b16 %v773
    %v841 = vunpack.c.h.b16 %v773
    %v842 = vunpack.c.l.b16 %v774
    %v843 = vunpack.c.h.b16 %v774
    %v844 = vunpack.c.l.b16 %v775
    %v845 = vunpack.c.h.b16 %v775
    %v846 = vunpack.c.l.b16 %v776
    %v847 = vunpack.c.h.b16 %v776
    %v848 = vunpack.c.l.b16 %v777
    %v849 = vunpack.c.h.b16 %v777
    %v850 = vunpack.c.l.b16 %v778
    %v851 = vunpack.c.h.b16 %v778
    %v852 = vunpack.c.l.b16 %v779
    %v853 = vunpack.c.h.b16 %v779
    %v854 = vunpack.c.l.b16 %v780
    %v855 = vunpack.c.h.b16 %v780
    %v856 = vunpack.c.l.b16 %v781
    %v857 = vunpack.c.h.b16 %v781
    %v858 = vunpack.c.l.b16 %v782
    %v859 = vunpack.c.h.b16 %v782
    %v860 = vunpack.c.l.b16 %v783
    %v861 = vunpack.c.h.b16 %v783
    %v862 = vunpack.c.l.b16 %v784
    %v863 = vunpack.c.h.b16 %v784
    %v864 = vunpack.c.l.b16 %v785
    %v865 = vunpack.c.h.b16 %v785
    %v866 = vunpack.c.l.b16 %v786
    %v867 = vunpack.c.h.b16 %v786
    %v868 = vunpack.c.l.b16 %v787
    %v869 = vunpack.c.h.b16 %v787
    %v870 = vunpack.c.l.b16 %v788
    %v871 = vunpack.c.h.b16 %v788
    %v872 = vunpack.c.l.b16 %v789
    %v873 = vunpack.c.h.b16 %v789
    %v874 = vunpack.c.l.b16 %v790
    %v875 = vunpack.c.h.b16 %v790
    %v876 = vunpack.c.l.b16 %v791
    %v877 = vunpack.c.h.b16 %v791
    %v878 = vunpack.c.l.b16 %v792
    %v879 = vunpack.c.h.b16 %v792
    %v880 = vunpack.c.l.b16 %v793
    %v881 = vunpack.c.h.b16 %v793
    %v882 = vunpack.c.l.b16 %v794
    %v883 = vunpack.c.h.b16 %v794
    %v884 = vunpack.c.l.b16 %v795
    %v885 = vunpack.c.h.b16 %v795
    %v886 = vunpack.c.l.b16 %v796
    %v887 = vunpack.c.h.b16 %v796
    %v888 = vunpack.c.l.b16 %v797
    %v889 = vunpack.c.h.b16 %v797
    %v890 = vunpack.c.l.b16 %v798
    %v891 = vunpack.c.h.b16 %v798
    %v892 = vunpack.c.l.b16 %v799
    %v893 = vunpack.c.h.b16 %v799
    %v894 = vunpack.c.l.b16 %v800
    %v895 = vunpack.c.h.b16 %v800
    %v896 = vunpack.c.l.b16 %v801
    %v897 = vunpack.c.h.b16 %v801
    %v898 = vpack.c.b16 %v836, %v834
    %v899 = vpack.c.b16 %v837, %v835
    %v900 = vpack.c.b16 %v840, %v838
    %v901 = vpack.c.b16 %v841, %v839
    %v902 = vpack.c.b16 %v844, %v842
    %v903 = vpack.c.b16 %v845, %v843
    %v904 = vpack.c.b16 %v848, %v846
    %v905 = vpack.c.b16 %v849, %v847
    %v906 = vpack.c.b16 %v852, %v850
    %v907 = vpack.c.b16 %v853, %v851
    %v908 = vpack.c.b16 %v856, %v854
    %v909 = vpack.c.b16 %v857, %v855
    %v910 = vpack.c.b16 %v860, %v858
    %v911 = vpack.c.b16 %v861, %v859
    %v912 = vpack.c.b16 %v864, %v862
    %v913 = vpack.c.b16 %v865, %v863
    %v914 = vpack.c.b16 %v868, %v866
    %v915 = vpack.c.b16 %v869, %v867
    %v916 = vpack.c.b16 %v872, %v870
    %v917 = vpack.c.b16 %v873, %v871
    %v918 = vpack.c.b16 %v876, %v874
    %v919 = vpack.c.b16 %v877, %v875
    %v920 = vpack.c.b16 %v880, %v878
    %v921 = vpack.c.b16 %v881, %v879
    %v922 = vpack.c.b16 %v884, %v882
    %v923 = vpack.c.b16 %v885, %v883
    %v924 = vpack.c.b16 %v888, %v886
    %v925 = vpack.c.b16 %v889, %v887
    %v926 = vpack.c.b16 %v892, %v890
    %v927 = vpack.c.b16 %v893, %v891
    %v928 = vpack.c.b16 %v896, %v894
    %v929 = vpack.c.b16 %v897, %v895
    %962 = vmatprep.subr.bf16.mxu0 %v899
    %963 = vmatpush1.bf16.msra.mxu0 %v898
    %964 = vmatprep.subr.bf16.mxu0 %v901
    %965 = vmatpush1.bf16.msra.mxu0 %v900
    %966 = vmatprep.subr.bf16.mxu0 %v903
    %967 = vmatpush1.bf16.msra.mxu0 %v902
    %968 = vmatprep.subr.bf16.mxu0 %v905
    %969 = vmatpush1.bf16.msra.mxu0 %v904
    %970 = vmatprep.subr.bf16.mxu0 %v907
    %971 = vmatpush1.bf16.msra.mxu0 %v906
    %972 = vmatprep.subr.bf16.mxu0 %v909
    %973 = vmatpush1.bf16.msra.mxu0 %v908
    %974 = vmatprep.subr.bf16.mxu0 %v911
    %975 = vmatpush1.bf16.msra.mxu0 %v910
    %976 = vmatprep.subr.bf16.mxu0 %v913
    %977 = vmatpush1.bf16.msra.mxu0 %v912
    %978 = vmatprep.subr.bf16.mxu0 %v915
    %979 = vmatpush1.bf16.msra.mxu0 %v914
    %980 = vmatprep.subr.bf16.mxu0 %v917
    %981 = vmatpush1.bf16.msra.mxu0 %v916
    %982 = vmatprep.subr.bf16.mxu0 %v919
    %983 = vmatpush1.bf16.msra.mxu0 %v918
    %984 = vmatprep.subr.bf16.mxu0 %v921
    %985 = vmatpush1.bf16.msra.mxu0 %v920
    %986 = vmatprep.subr.bf16.mxu0 %v923
    %987 = vmatpush1.bf16.msra.mxu0 %v922
    %988 = vmatprep.subr.bf16.mxu0 %v925
    %989 = vmatpush1.bf16.msra.mxu0 %v924
    %990 = vmatprep.subr.bf16.mxu0 %v927
    %991 = vmatpush1.bf16.msra.mxu0 %v926
    %992 = vmatprep.subr.bf16.mxu0 %v929
    %993 = vmatpush1.bf16.msra.mxu0 %v928
    %994 = vmatprep.mubr.bf16.mxu0 %v768
    %995 = vmatmul.mubr.bf16.gmra.mrb[0].mxu0 %v767
    %v996 = vpop.f32.mrb[0].mxu0
    %v997 = vadd.f32 0.0, %v996
    %v998 = vpop.f32.mrb[0].mxu0
    %v999 = vadd.f32 0.0, %v998
    %v1000 = vpop.f32.mrb[0].mxu0
    %v1001 = vpop.f32.mrb[0].mxu0
    %1002 = vdwg.mxu0
    %v1003 = vrot.slane %v997, 4
    %v1004 = vadd.f32 %v997, %v1003
    %v1005 = vrot.slane %v1004, 2
    %v1006 = vadd.f32 %v1004, %v1005
    %v1007 = vrot.slane %v1006, 1
    %v1008 = vadd.f32 %v1006, %v1007
    %v1009 = vrot.slane %v999, 4
    %v1010 = vadd.f32 %v999, %v1009
    %v1011 = vrot.slane %v1010, 2
    %v1012 = vadd.f32 %v1010, %v1011
    %v1013 = vrot.slane %v1012, 1
    %v1014 = vadd.f32 %v1012, %v1013
    %v1015 = vmul.f32 %v1008, 0.125
    %v1016 = vmul.f32 %v1014, 0.125
    %v1017 = vsub.f32 %v997, %v1015
    %v1018 = vsub.f32 %v999, %v1016
    %v1019 = vmul.f32 %v1017, %v1017
    %v1020 = vmul.f32 %v1018, %v1018
    %v1021 = vrot.slane %v1019, 4
    %v1022 = vadd.f32 %v1019, %v1021
    %v1023 = vrot.slane %v1022, 2
    %v1024 = vadd.f32 %v1022, %v1023
    %v1025 = vrot.slane %v1024, 1
    %v1026 = vadd.f32 %v1024, %v1025
    %v1027 = vrot.slane %v1020, 4
    %v1028 = vadd.f32 %v1020, %v1027
    %v1029 = vrot.slane %v1028, 2
    %v1030 = vadd.f32 %v1028, %v1029
    %v1031 = vrot.slane %v1030, 1
    %v1032 = vadd.f32 %v1030, %v1031
    %v1033 = vmul.f32 %v1026, 0.125
    %v1034 = vmul.f32 %v1032, 0.125
    %s1035 = scalar_lea.vmem [#allocation7], 8
    %v1036 = vld [vmem:[%s1035] ss:$2 sm:$0x3]
    %v1037 = vadd.f32 %v1033, 1e-05
    %v1038 = vadd.f32 %v1034, 1e-05
    %v1039 = vrsqrt.pop %v1037
    %v1040 = vrsqrt.pop %v1038
    %v1043 = vcombine.low %v1039, %v1040
    %v1045 = vunpack.c.l.s4 1966171168
    %v1046 = vunpack.c.0.s8 %v1045
    %v1047 = vlaneseq
    %v1048 = vshrl.u32 %v1047, 7
    %v1049 = vsub.s32 %v1046, %v1048
    %v1050 = vrot.slane %v1043, %v1049
    %v1052 = vunpack.c.l.s4 1966171168
    %v1053 = vunpack.c.0.s8 %v1052
    %v1054 = vlaneseq
    %v1055 = vshrl.u32 %v1054, 7
    %v1056 = vsub.s32 %v1053, %v1055
    %v1057 = vrot.slane %v1050, %v1056
    %v1059 = vmul.f32 %v1036, %v1057
    %s1060 = scalar_lea.vmem %s1035, 1 [#allocation7]
    %v1061 = vld [vmem:[%s1060] ss:$2 sm:$0x3]
    %v1063 = vlaneseq
    %v1064 = vshrl.u32 %v1063, 7
    %v1065 = vsub.s32 0, %v1064
    %v1066 = vrot.slane %v1059, %v1065
    %v1067 = vlaneseq
    %v1068 = vshrl.u32 %v1067, 7
    %v1069 = vsub.s32 1, %v1068
    %v1070 = vrot.slane %v1059, %v1069
    %v1073 = vmul.f32 %v1015, %v1066
    %v1074 = vmul.f32 %v1016, %v1070
    %v1077 = vcombine.low %v1073, %v1074
    %v1079 = vunpack.c.l.s4 1966171168
    %v1080 = vunpack.c.0.s8 %v1079
    %v1081 = vlaneseq
    %v1082 = vshrl.u32 %v1081, 7
    %v1083 = vsub.s32 %v1080, %v1082
    %v1084 = vrot.slane %v1077, %v1083
    %v1086 = vunpack.c.l.s4 1966171168
    %v1087 = vunpack.c.0.s8 %v1086
    %v1088 = vlaneseq
    %v1089 = vshrl.u32 %v1088, 7
    %v1090 = vsub.s32 %v1087, %v1089
    %v1091 = vrot.slane %v1084, %v1090
    %v1093 = vsub.f32 %v1061, %v1091
    %v1094 = vmul.f32 %v997, %v1066
    %v1095 = vmul.f32 %v999, %v1070
    %v1097 = vlaneseq
    %v1098 = vshrl.u32 %v1097, 7
    %v1099 = vsub.s32 0, %v1098
    %v1100 = vrot.slane %v1093, %v1099
    %v1101 = vlaneseq
    %v1102 = vshrl.u32 %v1101, 7
    %v1103 = vsub.s32 1, %v1102
    %v1104 = vrot.slane %v1093, %v1103
    %v1107 = vadd.f32 %v1094, %v1100
    %v1108 = vadd.f32 %v1095, %v1104
    %v1109 = vmax.f32 %v1107, 0.0
    %v1110 = vmax.f32 %v1108, 0.0
    %v1111 = vpack.c.bf16 %v1109, %v1109
    %v1112 = vpack.c.bf16 %v1110, %v1110
    %s1113 = scalar_lea.vmem [#allocation5], 768
    %v1114 = vld [vmem:[%s1113] sm:$0xff]
    %v1115 = vld [vmem:[%s1113 + $0x8] sm:$0xff]
    %v1116 = vld [vmem:[%s1113 + $0x10] sm:$0xff]
    %v1117 = vld [vmem:[%s1113 + $0x18] sm:$0xff]
    %v1118 = vld [vmem:[%s1113 + $0x20] sm:$0xff]
    %v1119 = vld [vmem:[%s1113 + $0x28] sm:$0xff]
    %v1120 = vld [vmem:[%s1113 + $0x30] sm:$0xff]
    %v1121 = vld [vmem:[%s1113 + $0x38] sm:$0xff]
    %v1122 = vld [vmem:[%s1113 + $0x40] sm:$0xff]
    %v1123 = vld [vmem:[%s1113 + $0x48] sm:$0xff]
    %v1124 = vld [vmem:[%s1113 + $0x50] sm:$0xff]
    %v1125 = vld [vmem:[%s1113 + $0x58] sm:$0xff]
    %v1126 = vld [vmem:[%s1113 + $0x60] sm:$0xff]
    %v1127 = vld [vmem:[%s1113 + $0x68] sm:$0xff]
    %v1128 = vld [vmem:[%s1113 + $0x70] sm:$0xff]
    %v1129 = vld [vmem:[%s1113 + $0x78] sm:$0xff]
    %v1130 = vld [vmem:[%s1113 + $0x80] sm:$0xff]
    %v1131 = vld [vmem:[%s1113 + $0x88] sm:$0xff]
    %v1132 = vld [vmem:[%s1113 + $0x90] sm:$0xff]
    %v1133 = vld [vmem:[%s1113 + $0x98] sm:$0xff]
    %v1134 = vld [vmem:[%s1113 + $0xa0] sm:$0xff]
    %v1135 = vld [vmem:[%s1113 + $0xa8] sm:$0xff]
    %v1136 = vld [vmem:[%s1113 + $0xb0] sm:$0xff]
    %v1137 = vld [vmem:[%s1113 + $0xb8] sm:$0xff]
    %v1138 = vld [vmem:[%s1113 + $0xc0] sm:$0xff]
    %v1139 = vld [vmem:[%s1113 + $0xc8] sm:$0xff]
    %v1140 = vld [vmem:[%s1113 + $0xd0] sm:$0xff]
    %v1141 = vld [vmem:[%s1113 + $0xd8] sm:$0xff]
    %v1142 = vld [vmem:[%s1113 + $0xe0] sm:$0xff]
    %v1143 = vld [vmem:[%s1113 + $0xe8] sm:$0xff]
    %v1144 = vld [vmem:[%s1113 + $0xf0] sm:$0xff]
    %v1145 = vld [vmem:[%s1113 + $0xf8] sm:$0xff]
    %v1178 = vunpack.c.l.b16 %v1114
    %v1179 = vunpack.c.h.b16 %v1114
    %v1180 = vunpack.c.l.b16 %v1115
    %v1181 = vunpack.c.h.b16 %v1115
    %v1182 = vunpack.c.l.b16 %v1116
    %v1183 = vunpack.c.h.b16 %v1116
    %v1184 = vunpack.c.l.b16 %v1117
    %v1185 = vunpack.c.h.b16 %v1117
    %v1186 = vunpack.c.l.b16 %v1118
    %v1187 = vunpack.c.h.b16 %v1118
    %v1188 = vunpack.c.l.b16 %v1119
    %v1189 = vunpack.c.h.b16 %v1119
    %v1190 = vunpack.c.l.b16 %v1120
    %v1191 = vunpack.c.h.b16 %v1120
    %v1192 = vunpack.c.l.b16 %v1121
    %v1193 = vunpack.c.h.b16 %v1121
    %v1194 = vunpack.c.l.b16 %v1122
    %v1195 = vunpack.c.h.b16 %v1122
    %v1196 = vunpack.c.l.b16 %v1123
    %v1197 = vunpack.c.h.b16 %v1123
    %v1198 = vunpack.c.l.b16 %v1124
    %v1199 = vunpack.c.h.b16 %v1124
    %v1200 = vunpack.c.l.b16 %v1125
    %v1201 = vunpack.c.h.b16 %v1125
    %v1202 = vunpack.c.l.b16 %v1126
    %v1203 = vunpack.c.h.b16 %v1126
    %v1204 = vunpack.c.l.b16 %v1127
    %v1205 = vunpack.c.h.b16 %v1127
    %v1206 = vunpack.c.l.b16 %v1128
    %v1207 = vunpack.c.h.b16 %v1128
    %v1208 = vunpack.c.l.b16 %v1129
    %v1209 = vunpack.c.h.b16 %v1129
    %v1210 = vunpack.c.l.b16 %v1130
    %v1211 = vunpack.c.h.b16 %v1130
    %v1212 = vunpack.c.l.b16 %v1131
    %v1213 = vunpack.c.h.b16 %v1131
    %v1214 = vunpack.c.l.b16 %v1132
    %v1215 = vunpack.c.h.b16 %v1132
    %v1216 = vunpack.c.l.b16 %v1133
    %v1217 = vunpack.c.h.b16 %v1133
    %v1218 = vunpack.c.l.b16 %v1134
    %v1219 = vunpack.c.h.b16 %v1134
    %v1220 = vunpack.c.l.b16 %v1135
    %v1221 = vunpack.c.h.b16 %v1135
    %v1222 = vunpack.c.l.b16 %v1136
    %v1223 = vunpack.c.h.b16 %v1136
    %v1224 = vunpack.c.l.b16 %v1137
    %v1225 = vunpack.c.h.b16 %v1137
    %v1226 = vunpack.c.l.b16 %v1138
    %v1227 = vunpack.c.h.b16 %v1138
    %v1228 = vunpack.c.l.b16 %v1139
    %v1229 = vunpack.c.h.b16 %v1139
    %v1230 = vunpack.c.l.b16 %v1140
    %v1231 = vunpack.c.h.b16 %v1140
    %v1232 = vunpack.c.l.b16 %v1141
    %v1233 = vunpack.c.h.b16 %v1141
    %v1234 = vunpack.c.l.b16 %v1142
    %v1235 = vunpack.c.h.b16 %v1142
    %v1236 = vunpack.c.l.b16 %v1143
    %v1237 = vunpack.c.h.b16 %v1143
    %v1238 = vunpack.c.l.b16 %v1144
    %v1239 = vunpack.c.h.b16 %v1144
    %v1240 = vunpack.c.l.b16 %v1145
    %v1241 = vunpack.c.h.b16 %v1145
    %v1242 = vpack.c.b16 %v1180, %v1178
    %v1243 = vpack.c.b16 %v1181, %v1179
    %v1244 = vpack.c.b16 %v1184, %v1182
    %v1245 = vpack.c.b16 %v1185, %v1183
    %v1246 = vpack.c.b16 %v1188, %v1186
    %v1247 = vpack.c.b16 %v1189, %v1187
    %v1248 = vpack.c.b16 %v1192, %v1190
    %v1249 = vpack.c.b16 %v1193, %v1191
    %v1250 = vpack.c.b16 %v1196, %v1194
    %v1251 = vpack.c.b16 %v1197, %v1195
    %v1252 = vpack.c.b16 %v1200, %v1198
    %v1253 = vpack.c.b16 %v1201, %v1199
    %v1254 = vpack.c.b16 %v1204, %v1202
    %v1255 = vpack.c.b16 %v1205, %v1203
    %v1256 = vpack.c.b16 %v1208, %v1206
    %v1257 = vpack.c.b16 %v1209, %v1207
    %v1258 = vpack.c.b16 %v1212, %v1210
    %v1259 = vpack.c.b16 %v1213, %v1211
    %v1260 = vpack.c.b16 %v1216, %v1214
    %v1261 = vpack.c.b16 %v1217, %v1215
    %v1262 = vpack.c.b16 %v1220, %v1218
    %v1263 = vpack.c.b16 %v1221, %v1219
    %v1264 = vpack.c.b16 %v1224, %v1222
    %v1265 = vpack.c.b16 %v1225, %v1223
    %v1266 = vpack.c.b16 %v1228, %v1226
    %v1267 = vpack.c.b16 %v1229, %v1227
    %v1268 = vpack.c.b16 %v1232, %v1230
    %v1269 = vpack.c.b16 %v1233, %v1231
    %v1270 = vpack.c.b16 %v1236, %v1234
    %v1271 = vpack.c.b16 %v1237, %v1235
    %v1272 = vpack.c.b16 %v1240, %v1238
    %v1273 = vpack.c.b16 %v1241, %v1239
    %1306 = vmatprep.subr.bf16.mxu0 %v1243
    %1307 = vmatpush1.bf16.msra.mxu0 %v1242
    %1308 = vmatprep.subr.bf16.mxu0 %v1245
    %1309 = vmatpush1.bf16.msra.mxu0 %v1244
    %1310 = vmatprep.subr.bf16.mxu0 %v1247
    %1311 = vmatpush1.bf16.msra.mxu0 %v1246
    %1312 = vmatprep.subr.bf16.mxu0 %v1249
    %1313 = vmatpush1.bf16.msra.mxu0 %v1248
    %1314 = vmatprep.subr.bf16.mxu0 %v1251
    %1315 = vmatpush1.bf16.msra.mxu0 %v1250
    %1316 = vmatprep.subr.bf16.mxu0 %v1253
    %1317 = vmatpush1.bf16.msra.mxu0 %v1252
    %1318 = vmatprep.subr.bf16.mxu0 %v1255
    %1319 = vmatpush1.bf16.msra.mxu0 %v1254
    %1320 = vmatprep.subr.bf16.mxu0 %v1257
    %1321 = vmatpush1.bf16.msra.mxu0 %v1256
    %1322 = vmatprep.subr.bf16.mxu0 %v1259
    %1323 = vmatpush1.bf16.msra.mxu0 %v1258
    %1324 = vmatprep.subr.bf16.mxu0 %v1261
    %1325 = vmatpush1.bf16.msra.mxu0 %v1260
    %1326 = vmatprep.subr.bf16.mxu0 %v1263
    %1327 = vmatpush1.bf16.msra.mxu0 %v1262
    %1328 = vmatprep.subr.bf16.mxu0 %v1265
    %1329 = vmatpush1.bf16.msra.mxu0 %v1264
    %1330 = vmatprep.subr.bf16.mxu0 %v1267
    %1331 = vmatpush1.bf16.msra.mxu0 %v1266
    %1332 = vmatprep.subr.bf16.mxu0 %v1269
    %1333 = vmatpush1.bf16.msra.mxu0 %v1268
    %1334 = vmatprep.subr.bf16.mxu0 %v1271
    %1335 = vmatpush1.bf16.msra.mxu0 %v1270
    %1336 = vmatprep.subr.bf16.mxu0 %v1273
    %1337 = vmatpush1.bf16.msra.mxu0 %v1272
    %1338 = vmatprep.mubr.bf16.mxu0 %v1112
    %1339 = vmatmul.mubr.bf16.gmra.mrb[0].mxu0 %v1111
    %v1340 = vpop.f32.mrb[0].mxu0
    %v1341 = vadd.f32 0.0, %v1340
    %v1342 = vpop.f32.mrb[0].mxu0
    %v1343 = vadd.f32 0.0, %v1342
    %v1344 = vpop.f32.mrb[0].mxu0
    %v1345 = vpop.f32.mrb[0].mxu0
    %1346 = vdwg.mxu0
    %v1347 = vrot.slane %v1341, 4
    %v1348 = vadd.f32 %v1341, %v1347
    %v1349 = vrot.slane %v1348, 2
    %v1350 = vadd.f32 %v1348, %v1349
    %v1351 = vrot.slane %v1350, 1
    %v1352 = vadd.f32 %v1350, %v1351
    %v1353 = vrot.slane %v1343, 4
    %v1354 = vadd.f32 %v1343, %v1353
    %v1355 = vrot.slane %v1354, 2
    %v1356 = vadd.f32 %v1354, %v1355
    %v1357 = vrot.slane %v1356, 1
    %v1358 = vadd.f32 %v1356, %v1357
    %v1359 = vmul.f32 %v1352, 0.125
    %v1360 = vmul.f32 %v1358, 0.125
    %v1361 = vsub.f32 %v1341, %v1359
    %v1362 = vsub.f32 %v1343, %v1360
    %v1363 = vmul.f32 %v1361, %v1361
    %v1364 = vmul.f32 %v1362, %v1362
    %v1365 = vrot.slane %v1363, 4
    %v1366 = vadd.f32 %v1363, %v1365
    %v1367 = vrot.slane %v1366, 2
    %v1368 = vadd.f32 %v1366, %v1367
    %v1369 = vrot.slane %v1368, 1
    %v1370 = vadd.f32 %v1368, %v1369
    %v1371 = vrot.slane %v1364, 4
    %v1372 = vadd.f32 %v1364, %v1371
    %v1373 = vrot.slane %v1372, 2
    %v1374 = vadd.f32 %v1372, %v1373
    %v1375 = vrot.slane %v1374, 1
    %v1376 = vadd.f32 %v1374, %v1375
    %v1377 = vmul.f32 %v1370, 0.125
    %v1378 = vmul.f32 %v1376, 0.125
    %s1379 = scalar_lea.vmem [#allocation7], 12
    %v1380 = vld [vmem:[%s1379] ss:$2 sm:$0x3]
    %v1381 = vadd.f32 %v1377, 1e-05
    %v1382 = vadd.f32 %v1378, 1e-05
    %v1383 = vrsqrt.pop %v1381
    %v1384 = vrsqrt.pop %v1382
    %v1387 = vcombine.low %v1383, %v1384
    %v1389 = vunpack.c.l.s4 1966171168
    %v1390 = vunpack.c.0.s8 %v1389
    %v1391 = vlaneseq
    %v1392 = vshrl.u32 %v1391, 7
    %v1393 = vsub.s32 %v1390, %v1392
    %v1394 = vrot.slane %v1387, %v1393
    %v1396 = vunpack.c.l.s4 1966171168
    %v1397 = vunpack.c.0.s8 %v1396
    %v1398 = vlaneseq
    %v1399 = vshrl.u32 %v1398, 7
    %v1400 = vsub.s32 %v1397, %v1399
    %v1401 = vrot.slane %v1394, %v1400
    %v1403 = vmul.f32 %v1380, %v1401
    %s1404 = scalar_lea.vmem %s1379, 1 [#allocation7]
    %v1405 = vld [vmem:[%s1404] ss:$2 sm:$0x3]
    %v1407 = vlaneseq
    %v1408 = vshrl.u32 %v1407, 7
    %v1409 = vsub.s32 0, %v1408
    %v1410 = vrot.slane %v1403, %v1409
    %v1411 = vlaneseq
    %v1412 = vshrl.u32 %v1411, 7
    %v1413 = vsub.s32 1, %v1412
    %v1414 = vrot.slane %v1403, %v1413
    %v1417 = vmul.f32 %v1359, %v1410
    %v1418 = vmul.f32 %v1360, %v1414
    %v1421 = vcombine.low %v1417, %v1418
    %v1423 = vunpack.c.l.s4 1966171168
    %v1424 = vunpack.c.0.s8 %v1423
    %v1425 = vlaneseq
    %v1426 = vshrl.u32 %v1425, 7
    %v1427 = vsub.s32 %v1424, %v1426
    %v1428 = vrot.slane %v1421, %v1427
    %v1430 = vunpack.c.l.s4 1966171168
    %v1431 = vunpack.c.0.s8 %v1430
    %v1432 = vlaneseq
    %v1433 = vshrl.u32 %v1432, 7
    %v1434 = vsub.s32 %v1431, %v1433
    %v1435 = vrot.slane %v1428, %v1434
    %v1437 = vsub.f32 %v1405, %v1435
    %v1438 = vmul.f32 %v1341, %v1410
    %v1439 = vmul.f32 %v1343, %v1414
    %v1441 = vlaneseq
    %v1442 = vshrl.u32 %v1441, 7
    %v1443 = vsub.s32 0, %v1442
    %v1444 = vrot.slane %v1437, %v1443
    %v1445 = vlaneseq
    %v1446 = vshrl.u32 %v1445, 7
    %v1447 = vsub.s32 1, %v1446
    %v1448 = vrot.slane %v1437, %v1447
    %v1451 = vadd.f32 %v1438, %v1444
    %v1452 = vadd.f32 %v1439, %v1448
    %v1453 = vmax.f32 %v1451, 0.0
    %v1454 = vmax.f32 %v1452, 0.0
    %v1455 = vpack.c.bf16 %v1453, %v1453
    %v1456 = vpack.c.bf16 %v1454, %v1454
    %s1457 = scalar_lea.vmem [#allocation5], 1024
    %v1458 = vld [vmem:[%s1457] sm:$0xff]
    %v1459 = vld [vmem:[%s1457 + $0x8] sm:$0xff]
    %v1460 = vld [vmem:[%s1457 + $0x10] sm:$0xff]
    %v1461 = vld [vmem:[%s1457 + $0x18] sm:$0xff]
    %v1462 = vld [vmem:[%s1457 + $0x20] sm:$0xff]
    %v1463 = vld [vmem:[%s1457 + $0x28] sm:$0xff]
    %v1464 = vld [vmem:[%s1457 + $0x30] sm:$0xff]
    %v1465 = vld [vmem:[%s1457 + $0x38] sm:$0xff]
    %v1466 = vld [vmem:[%s1457 + $0x40] sm:$0xff]
    %v1467 = vld [vmem:[%s1457 + $0x48] sm:$0xff]
    %v1468 = vld [vmem:[%s1457 + $0x50] sm:$0xff]
    %v1469 = vld [vmem:[%s1457 + $0x58] sm:$0xff]
    %v1470 = vld [vmem:[%s1457 + $0x60] sm:$0xff]
    %v1471 = vld [vmem:[%s1457 + $0x68] sm:$0xff]
    %v1472 = vld [vmem:[%s1457 + $0x70] sm:$0xff]
    %v1473 = vld [vmem:[%s1457 + $0x78] sm:$0xff]
    %v1474 = vld [vmem:[%s1457 + $0x80] sm:$0xff]
    %v1475 = vld [vmem:[%s1457 + $0x88] sm:$0xff]
    %v1476 = vld [vmem:[%s1457 + $0x90] sm:$0xff]
    %v1477 = vld [vmem:[%s1457 + $0x98] sm:$0xff]
    %v1478 = vld [vmem:[%s1457 + $0xa0] sm:$0xff]
    %v1479 = vld [vmem:[%s1457 + $0xa8] sm:$0xff]
    %v1480 = vld [vmem:[%s1457 + $0xb0] sm:$0xff]
    %v1481 = vld [vmem:[%s1457 + $0xb8] sm:$0xff]
    %v1482 = vld [vmem:[%s1457 + $0xc0] sm:$0xff]
    %v1483 = vld [vmem:[%s1457 + $0xc8] sm:$0xff]
    %v1484 = vld [vmem:[%s1457 + $0xd0] sm:$0xff]
    %v1485 = vld [vmem:[%s1457 + $0xd8] sm:$0xff]
    %v1486 = vld [vmem:[%s1457 + $0xe0] sm:$0xff]
    %v1487 = vld [vmem:[%s1457 + $0xe8] sm:$0xff]
    %v1488 = vld [vmem:[%s1457 + $0xf0] sm:$0xff]
    %v1489 = vld [vmem:[%s1457 + $0xf8] sm:$0xff]
    %v1522 = vunpack.c.l.b16 %v1458
    %v1523 = vunpack.c.h.b16 %v1458
    %v1524 = vunpack.c.l.b16 %v1459
    %v1525 = vunpack.c.h.b16 %v1459
    %v1526 = vunpack.c.l.b16 %v1460
    %v1527 = vunpack.c.h.b16 %v1460
    %v1528 = vunpack.c.l.b16 %v1461
    %v1529 = vunpack.c.h.b16 %v1461
    %v1530 = vunpack.c.l.b16 %v1462
    %v1531 = vunpack.c.h.b16 %v1462
    %v1532 = vunpack.c.l.b16 %v1463
    %v1533 = vunpack.c.h.b16 %v1463
    %v1534 = vunpack.c.l.b16 %v1464
    %v1535 = vunpack.c.h.b16 %v1464
    %v1536 = vunpack.c.l.b16 %v1465
    %v1537 = vunpack.c.h.b16 %v1465
    %v1538 = vunpack.c.l.b16 %v1466
    %v1539 = vunpack.c.h.b16 %v1466
    %v1540 = vunpack.c.l.b16 %v1467
    %v1541 = vunpack.c.h.b16 %v1467
    %v1542 = vunpack.c.l.b16 %v1468
    %v1543 = vunpack.c.h.b16 %v1468
    %v1544 = vunpack.c.l.b16 %v1469
    %v1545 = vunpack.c.h.b16 %v1469
    %v1546 = vunpack.c.l.b16 %v1470
    %v1547 = vunpack.c.h.b16 %v1470
    %v1548 = vunpack.c.l.b16 %v1471
    %v1549 = vunpack.c.h.b16 %v1471
    %v1550 = vunpack.c.l.b16 %v1472
    %v1551 = vunpack.c.h.b16 %v1472
    %v1552 = vunpack.c.l.b16 %v1473
    %v1553 = vunpack.c.h.b16 %v1473
    %v1554 = vunpack.c.l.b16 %v1474
    %v1555 = vunpack.c.h.b16 %v1474
    %v1556 = vunpack.c.l.b16 %v1475
    %v1557 = vunpack.c.h.b16 %v1475
    %v1558 = vunpack.c.l.b16 %v1476
    %v1559 = vunpack.c.h.b16 %v1476
    %v1560 = vunpack.c.l.b16 %v1477
    %v1561 = vunpack.c.h.b16 %v1477
    %v1562 = vunpack.c.l.b16 %v1478
    %v1563 = vunpack.c.h.b16 %v1478
    %v1564 = vunpack.c.l.b16 %v1479
    %v1565 = vunpack.c.h.b16 %v1479
    %v1566 = vunpack.c.l.b16 %v1480
    %v1567 = vunpack.c.h.b16 %v1480
    %v1568 = vunpack.c.l.b16 %v1481
    %v1569 = vunpack.c.h.b16 %v1481
    %v1570 = vunpack.c.l.b16 %v1482
    %v1571 = vunpack.c.h.b16 %v1482
    %v1572 = vunpack.c.l.b16 %v1483
    %v1573 = vunpack.c.h.b16 %v1483
    %v1574 = vunpack.c.l.b16 %v1484
    %v1575 = vunpack.c.h.b16 %v1484
    %v1576 = vunpack.c.l.b16 %v1485
    %v1577 = vunpack.c.h.b16 %v1485
    %v1578 = vunpack.c.l.b16 %v1486
    %v1579 = vunpack.c.h.b16 %v1486
    %v1580 = vunpack.c.l.b16 %v1487
    %v1581 = vunpack.c.h.b16 %v1487
    %v1582 = vunpack.c.l.b16 %v1488
    %v1583 = vunpack.c.h.b16 %v1488
    %v1584 = vunpack.c.l.b16 %v1489
    %v1585 = vunpack.c.h.b16 %v1489
    %v1586 = vpack.c.b16 %v1524, %v1522
    %v1587 = vpack.c.b16 %v1525, %v1523
    %v1588 = vpack.c.b16 %v1528, %v1526
    %v1589 = vpack.c.b16 %v1529, %v1527
    %v1590 = vpack.c.b16 %v1532, %v1530
    %v1591 = vpack.c.b16 %v1533, %v1531
    %v1592 = vpack.c.b16 %v1536, %v1534
    %v1593 = vpack.c.b16 %v1537, %v1535
    %v1594 = vpack.c.b16 %v1540, %v1538
    %v1595 = vpack.c.b16 %v1541, %v1539
    %v1596 = vpack.c.b16 %v1544, %v1542
    %v1597 = vpack.c.b16 %v1545, %v1543
    %v1598 = vpack.c.b16 %v1548, %v1546
    %v1599 = vpack.c.b16 %v1549, %v1547
    %v1600 = vpack.c.b16 %v1552, %v1550
    %v1601 = vpack.c.b16 %v1553, %v1551
    %v1602 = vpack.c.b16 %v1556, %v1554
    %v1603 = vpack.c.b16 %v1557, %v1555
    %v1604 = vpack.c.b16 %v1560, %v1558
    %v1605 = vpack.c.b16 %v1561, %v1559
    %v1606 = vpack.c.b16 %v1564, %v1562
    %v1607 = vpack.c.b16 %v1565, %v1563
    %v1608 = vpack.c.b16 %v1568, %v1566
    %v1609 = vpack.c.b16 %v1569, %v1567
    %v1610 = vpack.c.b16 %v1572, %v1570
    %v1611 = vpack.c.b16 %v1573, %v1571
    %v1612 = vpack.c.b16 %v1576, %v1574
    %v1613 = vpack.c.b16 %v1577, %v1575
    %v1614 = vpack.c.b16 %v1580, %v1578
    %v1615 = vpack.c.b16 %v1581, %v1579
    %v1616 = vpack.c.b16 %v1584, %v1582
    %v1617 = vpack.c.b16 %v1585, %v1583
    %1650 = vmatprep.subr.bf16.mxu0 %v1587
    %1651 = vmatpush1.bf16.msra.mxu0 %v1586
    %1652 = vmatprep.subr.bf16.mxu0 %v1589
    %1653 = vmatpush1.bf16.msra.mxu0 %v1588
    %1654 = vmatprep.subr.bf16.mxu0 %v1591
    %1655 = vmatpush1.bf16.msra.mxu0 %v1590
    %1656 = vmatprep.subr.bf16.mxu0 %v1593
    %1657 = vmatpush1.bf16.msra.mxu0 %v1592
    %1658 = vmatprep.subr.bf16.mxu0 %v1595
    %1659 = vmatpush1.bf16.msra.mxu0 %v1594
    %1660 = vmatprep.subr.bf16.mxu0 %v1597
    %1661 = vmatpush1.bf16.msra.mxu0 %v1596
    %1662 = vmatprep.subr.bf16.mxu0 %v1599
    %1663 = vmatpush1.bf16.msra.mxu0 %v1598
    %1664 = vmatprep.subr.bf16.mxu0 %v1601
    %1665 = vmatpush1.bf16.msra.mxu0 %v1600
    %1666 = vmatprep.subr.bf16.mxu0 %v1603
    %1667 = vmatpush1.bf16.msra.mxu0 %v1602
    %1668 = vmatprep.subr.bf16.mxu0 %v1605
    %1669 = vmatpush1.bf16.msra.mxu0 %v1604
    %1670 = vmatprep.subr.bf16.mxu0 %v1607
    %1671 = vmatpush1.bf16.msra.mxu0 %v1606
    %1672 = vmatprep.subr.bf16.mxu0 %v1609
    %1673 = vmatpush1.bf16.msra.mxu0 %v1608
    %1674 = vmatprep.subr.bf16.mxu0 %v1611
    %1675 = vmatpush1.bf16.msra.mxu0 %v1610
    %1676 = vmatprep.subr.bf16.mxu0 %v1613
    %1677 = vmatpush1.bf16.msra.mxu0 %v1612
    %1678 = vmatprep.subr.bf16.mxu0 %v1615
    %1679 = vmatpush1.bf16.msra.mxu0 %v1614
    %1680 = vmatprep.subr.bf16.mxu0 %v1617
    %1681 = vmatpush1.bf16.msra.mxu0 %v1616
    %1682 = vmatprep.mubr.bf16.mxu0 %v1456
    %1683 = vmatmul.mubr.bf16.gmra.mrb[0].mxu0 %v1455
    %v1684 = vpop.f32.mrb[0].mxu0
    %v1685 = vadd.f32 0.0, %v1684
    %v1686 = vpop.f32.mrb[0].mxu0
    %v1687 = vadd.f32 0.0, %v1686
    %v1688 = vpop.f32.mrb[0].mxu0
    %v1689 = vpop.f32.mrb[0].mxu0
    %1690 = vdwg.mxu0
    %v1691 = vrot.slane %v1685, 4
    %v1692 = vadd.f32 %v1685, %v1691
    %v1693 = vrot.slane %v1692, 2
    %v1694 = vadd.f32 %v1692, %v1693
    %v1695 = vrot.slane %v1694, 1
    %v1696 = vadd.f32 %v1694, %v1695
    %v1697 = vrot.slane %v1687, 4
    %v1698 = vadd.f32 %v1687, %v1697
    %v1699 = vrot.slane %v1698, 2
    %v1700 = vadd.f32 %v1698, %v1699
    %v1701 = vrot.slane %v1700, 1
    %v1702 = vadd.f32 %v1700, %v1701
    %v1703 = vmul.f32 %v1696, 0.125
    %v1704 = vmul.f32 %v1702, 0.125
    %v1705 = vsub.f32 %v1685, %v1703
    %v1706 = vsub.f32 %v1687, %v1704
    %v1707 = vmul.f32 %v1705, %v1705
    %v1708 = vmul.f32 %v1706, %v1706
    %v1709 = vrot.slane %v1707, 4
    %v1710 = vadd.f32 %v1707, %v1709
    %v1711 = vrot.slane %v1710, 2
    %v1712 = vadd.f32 %v1710, %v1711
    %v1713 = vrot.slane %v1712, 1
    %v1714 = vadd.f32 %v1712, %v1713
    %v1715 = vrot.slane %v1708, 4
    %v1716 = vadd.f32 %v1708, %v1715
    %v1717 = vrot.slane %v1716, 2
    %v1718 = vadd.f32 %v1716, %v1717
    %v1719 = vrot.slane %v1718, 1
    %v1720 = vadd.f32 %v1718, %v1719
    %v1721 = vmul.f32 %v1714, 0.125
    %v1722 = vmul.f32 %v1720, 0.125
    %s1723 = scalar_lea.vmem [#allocation7], 16
    %v1724 = vld [vmem:[%s1723] ss:$2 sm:$0x3]
    %v1725 = vadd.f32 %v1721, 1e-05
    %v1726 = vadd.f32 %v1722, 1e-05
    %v1727 = vrsqrt.pop %v1725
    %v1728 = vrsqrt.pop %v1726
    %v1731 = vcombine.low %v1727, %v1728
    %v1733 = vunpack.c.l.s4 1966171168
    %v1734 = vunpack.c.0.s8 %v1733
    %v1735 = vlaneseq
    %v1736 = vshrl.u32 %v1735, 7
    %v1737 = vsub.s32 %v1734, %v1736
    %v1738 = vrot.slane %v1731, %v1737
    %v1740 = vunpack.c.l.s4 1966171168
    %v1741 = vunpack.c.0.s8 %v1740
    %v1742 = vlaneseq
    %v1743 = vshrl.u32 %v1742, 7
    %v1744 = vsub.s32 %v1741, %v1743
    %v1745 = vrot.slane %v1738, %v1744
    %v1747 = vmul.f32 %v1724, %v1745
    %s1748 = scalar_lea.vmem %s1723, 1 [#allocation7]
    %v1749 = vld [vmem:[%s1748] ss:$2 sm:$0x3]
    %v1751 = vlaneseq
    %v1752 = vshrl.u32 %v1751, 7
    %v1753 = vsub.s32 0, %v1752
    %v1754 = vrot.slane %v1747, %v1753
    %v1755 = vlaneseq
    %v1756 = vshrl.u32 %v1755, 7
    %v1757 = vsub.s32 1, %v1756
    %v1758 = vrot.slane %v1747, %v1757
    %v1761 = vmul.f32 %v1703, %v1754
    %v1762 = vmul.f32 %v1704, %v1758
    %v1765 = vcombine.low %v1761, %v1762
    %v1767 = vunpack.c.l.s4 1966171168
    %v1768 = vunpack.c.0.s8 %v1767
    %v1769 = vlaneseq
    %v1770 = vshrl.u32 %v1769, 7
    %v1771 = vsub.s32 %v1768, %v1770
    %v1772 = vrot.slane %v1765, %v1771
    %v1774 = vunpack.c.l.s4 1966171168
    %v1775 = vunpack.c.0.s8 %v1774
    %v1776 = vlaneseq
    %v1777 = vshrl.u32 %v1776, 7
    %v1778 = vsub.s32 %v1775, %v1777
    %v1779 = vrot.slane %v1772, %v1778
    %v1781 = vsub.f32 %v1749, %v1779
    %v1782 = vmul.f32 %v1685, %v1754
    %v1783 = vmul.f32 %v1687, %v1758
    %v1785 = vlaneseq
    %v1786 = vshrl.u32 %v1785, 7
    %v1787 = vsub.s32 0, %v1786
    %v1788 = vrot.slane %v1781, %v1787
    %v1789 = vlaneseq
    %v1790 = vshrl.u32 %v1789, 7
    %v1791 = vsub.s32 1, %v1790
    %v1792 = vrot.slane %v1781, %v1791
    %v1795 = vadd.f32 %v1782, %v1788
    %v1796 = vadd.f32 %v1783, %v1792
    %v1797 = vmax.f32 %v1795, 0.0
    %v1798 = vmax.f32 %v1796, 0.0
    %v1799 = vpack.c.bf16 %v1797, %v1797
    %v1800 = vpack.c.bf16 %v1798, %v1798
    %v1801 = vld [vmem:[#allocation8] sm:$0xf]
    %v1802 = vld [vmem:[#allocation8 + $0x4] sm:$0xf]
    %v1803 = vld [vmem:[#allocation8 + $0x8] sm:$0xf]
    %v1804 = vld [vmem:[#allocation8 + $0xc] sm:$0xf]
    %v1805 = vld [vmem:[#allocation8 + $0x10] sm:$0xf]
    %v1806 = vld [vmem:[#allocation8 + $0x14] sm:$0xf]
    %v1807 = vld [vmem:[#allocation8 + $0x18] sm:$0xf]
    %v1808 = vld [vmem:[#allocation8 + $0x1c] sm:$0xf]
    %v1809 = vld [vmem:[#allocation8 + $0x20] sm:$0xf]
    %v1810 = vld [vmem:[#allocation8 + $0x24] sm:$0xf]
    %v1811 = vld [vmem:[#allocation8 + $0x28] sm:$0xf]
    %v1812 = vld [vmem:[#allocation8 + $0x2c] sm:$0xf]
    %v1813 = vld [vmem:[#allocation8 + $0x30] sm:$0xf]
    %v1814 = vld [vmem:[#allocation8 + $0x34] sm:$0xf]
    %v1815 = vld [vmem:[#allocation8 + $0x38] sm:$0xf]
    %v1816 = vld [vmem:[#allocation8 + $0x3c] sm:$0xf]
    %v1817 = vld [vmem:[#allocation8 + $0x40] sm:$0xf]
    %v1818 = vld [vmem:[#allocation8 + $0x44] sm:$0xf]
    %v1819 = vld [vmem:[#allocation8 + $0x48] sm:$0xf]
    %v1820 = vld [vmem:[#allocation8 + $0x4c] sm:$0xf]
    %v1821 = vld [vmem:[#allocation8 + $0x50] sm:$0xf]
    %v1822 = vld [vmem:[#allocation8 + $0x54] sm:$0xf]
    %v1823 = vld [vmem:[#allocation8 + $0x58] sm:$0xf]
    %v1824 = vld [vmem:[#allocation8 + $0x5c] sm:$0xf]
    %v1825 = vld [vmem:[#allocation8 + $0x60] sm:$0xf]
    %v1826 = vld [vmem:[#allocation8 + $0x64] sm:$0xf]
    %v1827 = vld [vmem:[#allocation8 + $0x68] sm:$0xf]
    %v1828 = vld [vmem:[#allocation8 + $0x6c] sm:$0xf]
    %v1829 = vld [vmem:[#allocation8 + $0x70] sm:$0xf]
    %v1830 = vld [vmem:[#allocation8 + $0x74] sm:$0xf]
    %v1831 = vld [vmem:[#allocation8 + $0x78] sm:$0xf]
    %v1832 = vld [vmem:[#allocation8 + $0x7c] sm:$0xf]
    %v1833 = vld [vmem:[%s4] sm:$0x1]
    %v1835 = vlaneseq
    %v1836 = vshrl.u32 %v1835, 7
    %v1837 = vsub.s32 0, %v1836
    %v1838 = vrot.slane %v1833, %v1837
    %v1872 = vunpack.c.l.b16 %v1801
    %v1873 = vunpack.c.l.b16 %v1802
    %v1874 = vunpack.c.l.b16 %v1803
    %v1875 = vunpack.c.l.b16 %v1804
    %v1876 = vunpack.c.l.b16 %v1805
    %v1877 = vunpack.c.l.b16 %v1806
    %v1878 = vunpack.c.l.b16 %v1807
    %v1879 = vunpack.c.l.b16 %v1808
    %v1880 = vunpack.c.l.b16 %v1809
    %v1881 = vunpack.c.l.b16 %v1810
    %v1882 = vunpack.c.l.b16 %v1811
    %v1883 = vunpack.c.l.b16 %v1812
    %v1884 = vunpack.c.l.b16 %v1813
    %v1885 = vunpack.c.l.b16 %v1814
    %v1886 = vunpack.c.l.b16 %v1815
    %v1887 = vunpack.c.l.b16 %v1816
    %v1888 = vunpack.c.l.b16 %v1817
    %v1889 = vunpack.c.l.b16 %v1818
    %v1890 = vunpack.c.l.b16 %v1819
    %v1891 = vunpack.c.l.b16 %v1820
    %v1892 = vunpack.c.l.b16 %v1821
    %v1893 = vunpack.c.l.b16 %v1822
    %v1894 = vunpack.c.l.b16 %v1823
    %v1895 = vunpack.c.l.b16 %v1824
    %v1896 = vunpack.c.l.b16 %v1825
    %v1897 = vunpack.c.l.b16 %v1826
    %v1898 = vunpack.c.l.b16 %v1827
    %v1899 = vunpack.c.l.b16 %v1828
    %v1900 = vunpack.c.l.b16 %v1829
    %v1901 = vunpack.c.l.b16 %v1830
    %v1902 = vunpack.c.l.b16 %v1831
    %v1903 = vunpack.c.l.b16 %v1832
    %v1904 = vpack.c.b16 %v1873, %v1872
    %v1905 = vpack.c.b16 %v1875, %v1874
    %v1906 = vpack.c.b16 %v1877, %v1876
    %v1907 = vpack.c.b16 %v1879, %v1878
    %v1908 = vpack.c.b16 %v1881, %v1880
    %v1909 = vpack.c.b16 %v1883, %v1882
    %v1910 = vpack.c.b16 %v1885, %v1884
    %v1911 = vpack.c.b16 %v1887, %v1886
    %v1912 = vpack.c.b16 %v1889, %v1888
    %v1913 = vpack.c.b16 %v1891, %v1890
    %v1914 = vpack.c.b16 %v1893, %v1892
    %v1915 = vpack.c.b16 %v1895, %v1894
    %v1916 = vpack.c.b16 %v1897, %v1896
    %v1917 = vpack.c.b16 %v1899, %v1898
    %v1918 = vpack.c.b16 %v1901, %v1900
    %v1919 = vpack.c.b16 %v1903, %v1902
    %1936 = vmatprep.subr.bf16.mxu0 0
    %1937 = vmatpush1.bf16.msra.mxu0 %v1904
    %1938 = vmatprep.subr.bf16.mxu0 0
    %1939 = vmatpush1.bf16.msra.mxu0 %v1905
    %1940 = vmatprep.subr.bf16.mxu0 0
    %1941 = vmatpush1.bf16.msra.mxu0 %v1906
    %1942 = vmatprep.subr.bf16.mxu0 0
    %1943 = vmatpush1.bf16.msra.mxu0 %v1907
    %1944 = vmatprep.subr.bf16.mxu0 0
    %1945 = vmatpush1.bf16.msra.mxu0 %v1908
    %1946 = vmatprep.subr.bf16.mxu0 0
    %1947 = vmatpush1.bf16.msra.mxu0 %v1909
    %1948 = vmatprep.subr.bf16.mxu0 0
    %1949 = vmatpush1.bf16.msra.mxu0 %v1910
    %1950 = vmatprep.subr.bf16.mxu0 0
    %1951 = vmatpush1.bf16.msra.mxu0 %v1911
    %1952 = vmatprep.subr.bf16.mxu0 0
    %1953 = vmatpush1.bf16.msra.mxu0 %v1912
    %1954 = vmatprep.subr.bf16.mxu0 0
    %1955 = vmatpush1.bf16.msra.mxu0 %v1913
    %1956 = vmatprep.subr.bf16.mxu0 0
    %1957 = vmatpush1.bf16.msra.mxu0 %v1914
    %1958 = vmatprep.subr.bf16.mxu0 0
    %1959 = vmatpush1.bf16.msra.mxu0 %v1915
    %1960 = vmatprep.subr.bf16.mxu0 0
    %1961 = vmatpush1.bf16.msra.mxu0 %v1916
    %1962 = vmatprep.subr.bf16.mxu0 0
    %1963 = vmatpush1.bf16.msra.mxu0 %v1917
    %1964 = vmatprep.subr.bf16.mxu0 0
    %1965 = vmatpush1.bf16.msra.mxu0 %v1918
    %1966 = vmatprep.subr.bf16.mxu0 0
    %1967 = vmatpush1.bf16.msra.mxu0 %v1919
    %1968 = vmatprep.mubr.bf16.mxu0 %v1800
    %1969 = vmatmul.mubr.bf16.gmra.mrb[0].mxu0 %v1799
    %v1970 = vpop.f32.mrb[0].mxu0
    %v1971 = vadd.f32 %v1838, %v1970
    %v1972 = vpop.f32.mrb[0].mxu0
    %v1973 = vpop.f32.mrb[0].mxu0
    %v1974 = vpop.f32.mrb[0].mxu0
    %1975 = vdwg.mxu0
    %1976 = vst [vmem:[#allocation10] sm:$0xff] %v1971
    // Predicated region
    $region38: #{tpu_custom_call.1} parent=1 // pred_check
      _
    $region39: #{tpu_custom_call.1} parent=1 // pred_check_branch
      %1978 = sbr.rel (0) target = $region41
    $region40: #{tpu_custom_call.1} parent=1 // pred_region
      %s1980 = ssub.s32 128, 128
      %1981 = vsyncadd [#allocation4], %s1980
      %s1983 = sshll.u32 [#allocation10], 4
      %s1984 = int_to_ptr.vmem [resolvable:$true] %s1983
      %1986 = dma.vmem_to_hbm [thread:$0]  %s1984, 128, %s5, [#allocation4]
    $region41: #{tpu_custom_call.1} parent=1 // pred_fallthru
      _
    // Predicated region
    $region42: #{tpu_custom_call.1} parent=1 // pred_check
      _
    $region43: #{tpu_custom_call.1} parent=1 // pred_check_branch
      %1988 = sbr.rel (0) target = $region45
    $region44: #{tpu_custom_call.1} parent=1 // pred_region
      %1989 = dma.done [#allocation4], 128
    $region45: #{tpu_custom_call.1} parent=1 // pred_fallthru
      _
    %1990 = vsyncpa [#allocation3], 1
    %1991 = vsyncpa [#allocation6], 1
    %1992 = vsyncpa [#allocation9], 1
    %1993 = vsyncpa [#allocation4], 1

</llo_original>
